<compile_context>
chip_gen: v7x
topology: tpu7x:2x2x1
jax: 0.10.0
libtpu: 0.0.40
codegen_flags: <defaults>
</compile_context>

<pallas_src>
from functools import partial

import numpy as np
import jax
import jax.numpy as jnp
from jax.experimental import pallas as pl
from jax.experimental.pallas import tpu as pltpu  # noqa: F401  (no grids/scratch needed at these sizes)

# ----------------------- small synthetic sizes -------------------------------
B_BATCH = 2          # b
N_FRAMES = 4         # f  (LSTM sequence length)
C_IN = 3             # image channels
H_IMG = W_IMG = 16   # spatial
C_MID = 8            # conv-stem output channels (backbone stand-in)
IN_FEATS = 32        # stands in for resnet50's 2048-d feature (kept small)
HIDDEN = IN_FEATS    # LSTM hidden size == in_feats (as in the PyTorch module)
KSIZE = 3


# ----------------------- backbone kernel (all frames in one block) -----------
def _backbone_kernel(patch_ref, wconv_ref, bconv_ref, wproj_ref, bproj_ref, out_ref,
                     *, n_frames, hw):
    # patch_ref: (n*HW, K) f32   wconv: (K, C_MID) bf16   bconv: (1, C_MID) f32
    # wproj: (C_MID, IN_FEATS) bf16   bproj: (1, IN_FEATS) f32   out_ref: (n, IN_FEATS) f32
    p = patch_ref[...].astype(jnp.bfloat16)                              # (n*HW, K)
    feat = jnp.dot(p, wconv_ref[...],
                   preferred_element_type=jnp.float32) + bconv_ref[...]  # conv-as-matmul
    feat = jnp.maximum(feat, 0.0)                                        # ReLU, (n*HW, C_MID)

    # per-frame global average pool (static, tile-aligned sublane slices)
    pooled = jnp.concatenate(
        [jnp.mean(feat[i * hw:(i + 1) * hw, :], axis=0, keepdims=True)
         for i in range(n_frames)],
        axis=0)                                                          # (n, C_MID)

    proj = jnp.dot(pooled.astype(jnp.bfloat16), wproj_ref[...],
                   preferred_element_type=jnp.float32) + bproj_ref[...]
    out_ref[...] = jnp.maximum(proj, 0.0)                                # (n, IN_FEATS)


def backbone_pallas(patches2d, wconv, bconv, wproj, bproj, *, n_frames, hw):
    return pl.pallas_call(
        partial(_backbone_kernel, n_frames=n_frames, hw=hw),
        out_shape=jax.ShapeDtypeStruct((n_frames, IN_FEATS), jnp.float32),
    )(patches2d, wconv, bconv, wproj, bproj)


# ----------------------- fused bidirectional LSTM layer ----------------------
def _bilstm_kernel(*refs, T, B, with_head):
    # layout: x rows are time-major, batch-minor: row = t*B + b
    # wih: (2, D, 4H) bf16   whh: (2, H, 4H) bf16   b: (2, 1, 4H) f32 (= b_ih + b_hh)
    # gate order along 4H: i, f, g, o (PyTorch convention)
    if with_head:
        x_ref, wih_ref, whh_ref, b_ref, wout_ref, bout_ref, out_ref, logit_ref = refs
    else:
        x_ref, wih_ref, whh_ref, b_ref, out_ref = refs
        wout_ref = bout_ref = logit_ref = None

    H4 = whh_ref.shape[-1]
    H = H4 // 4

    # ---- hoisted input projections: one fused (T*B, D) x (D, 4H=128) matmul per dir ----
    x = x_ref[...].astype(jnp.bfloat16)                                   # (T*B, D)
    xp_f = jnp.dot(x, wih_ref[0], preferred_element_type=jnp.float32) + b_ref[0]   # (T*B, 4H)
    xp_b = jnp.dot(x, wih_ref[1], preferred_element_type=jnp.float32) + b_ref[1]   # (T*B, 4H)

    whh_f = whh_ref[0]                                                    # (H, 4H) bf16
    whh_b = whh_ref[1]

    def cell(pre, c):
        # pre: (B, 4H) f32 pre-activations; one sigmoid + one tanh over the full slab.
        s = jax.nn.sigmoid(pre)
        th = jnp.tanh(pre)
        i_g = s[:, 0 * H:1 * H]
        f_g = s[:, 1 * H:2 * H]
        g_g = th[:, 2 * H:3 * H]
        o_g = s[:, 3 * H:4 * H]
        c_new = f_g * c + i_g * g_g
        h_new = o_g * jnp.tanh(c_new)
        return h_new, c_new

    h_f = jnp.zeros((B, H), jnp.float32)
    c_f = jnp.zeros((B, H), jnp.float32)
    h_b = jnp.zeros((B, H), jnp.float32)
    c_b = jnp.zeros((B, H), jnp.float32)
    outs_f = [None] * T
    outs_b = [None] * T

    # fully unrolled recurrence (T is small & static); fwd processes time t,
    # bwd processes time T-1-t, interleaved so MXU/VALU/EUP slots stay filled.
    for t in range(T):
        tb = T - 1 - t
        pre_f = xp_f[t * B:(t + 1) * B, :] + jnp.dot(
            h_f.astype(jnp.bfloat16), whh_f, preferred_element_type=jnp.float32)
        pre_b = xp_b[tb * B:(tb + 1) * B, :] + jnp.dot(
            h_b.astype(jnp.bfloat16), whh_b, preferred_element_type=jnp.float32)
        h_f, c_f = cell(pre_f, c_f)
        h_b, c_b = cell(pre_b, c_b)
        outs_f[t] = h_f
        outs_b[tb] = h_b

    out_f = jnp.concatenate(outs_f, axis=0)                               # (T*B, H)
    out_b = jnp.concatenate(outs_b, axis=0)                               # (T*B, H)
    out = jnp.concatenate([out_f, out_b], axis=-1)                        # (T*B, 2H)
    out_ref[...] = out                                                    # single slab write

    if with_head:
        # output[:, -1, :] == rows of the last timestep; classifier fused here.
        last = out[(T - 1) * B:T * B, :]                                  # (B, 2H)
        logit_ref[...] = (jnp.dot(last, wout_ref[...],
                                  preferred_element_type=jnp.float32) + bout_ref[...])


def bilstm_layer_pallas(x2d, wih, whh, bias, *, T, B, head=None):
    H = whh.shape[1]
    if head is None:
        out = pl.pallas_call(
            partial(_bilstm_kernel, T=T, B=B, with_head=False),
            out_shape=jax.ShapeDtypeStruct((T * B, 2 * H), jnp.float32),
        )(x2d, wih, whh, bias)
        return out, None
    w_out, b_out = head
    out, logits = pl.pallas_call(
        partial(_bilstm_kernel, T=T, B=B, with_head=True),
        out_shape=(jax.ShapeDtypeStruct((T * B, 2 * H), jnp.float32),
                   jax.ShapeDtypeStruct((B, 1), jnp.float32)),
    )(x2d, wih, whh, bias, w_out, b_out)
    return out, logits


# ----------------------- host glue -------------------------------------------
def im2col(x_nchw, k=KSIZE, pad=1):
    n, c, h, w = x_nchw.shape
    xp = jnp.pad(x_nchw, ((0, 0), (0, 0), (pad, pad), (pad, pad)))
    cols = []
    for kh in range(k):
        for kw in range(k):
            cols.append(xp[:, :, kh:kh + h, kw:kw + w])      # (n, c, h, w)
    patches = jnp.stack(cols, axis=2)                        # (n, c, k*k, h, w)
    patches = patches.reshape(n, c * k * k, h * w)
    return jnp.transpose(patches, (0, 2, 1))                 # (n, h*w, c*k*k)


def forward(x, params):
    b, f, c, h, w = x.shape
    frames = x.reshape(b * f, c, h, w)                       # torch.reshape((b*f, c, h, w))
    patches = im2col(frames)                                 # (n, HW, K)
    n, hw, k = patches.shape
    feats = backbone_pallas(patches.reshape(n * hw, k),
                            params["wconv"], params["bconv"],
                            params["wproj"], params["bproj"],
                            n_frames=n, hw=hw)               # (b*f, IN_FEATS)

    # time-major, batch-minor 2D layout for the recurrent kernels: row = t*B + b
    x2d = feats.reshape(b, f, IN_FEATS).transpose(1, 0, 2).reshape(f * b, IN_FEATS)

    l0 = params["lstm"][0]
    h2d, _ = bilstm_layer_pallas(x2d, l0["wih"], l0["whh"], l0["b"], T=f, B=b)
    l1 = params["lstm"][1]
    _, logits = bilstm_layer_pallas(h2d, l1["wih"], l1["whh"], l1["b"], T=f, B=b,
                                    head=(params["w_out"], params["b_out"]))
    return logits                                            # (b, 1) == self.linear(output[:, -1, :])


# ----------------------- deterministic parameter init -------------------------
def init_params(key):
    ks = iter(jax.random.split(key, 64))

    def dense(k, shape, fan_in, dtype=jnp.float32):
        return (jax.random.normal(k, shape, jnp.float32) / np.sqrt(fan_in)).astype(dtype)

    params = {
        "wconv": dense(next(ks), (C_IN * KSIZE * KSIZE, C_MID), C_IN * KSIZE * KSIZE, jnp.bfloat16),
        "bconv": jnp.zeros((1, C_MID), jnp.float32),
        "wproj": dense(next(ks), (C_MID, IN_FEATS), C_MID, jnp.bfloat16),
        "bproj": jnp.zeros((1, IN_FEATS), jnp.float32),
        "lstm": [],
        "w_out": dense(next(ks), (2 * HIDDEN, 1), 2 * HIDDEN),
        "b_out": jnp.zeros((1, 1), jnp.float32),
    }
    d_in = IN_FEATS
    for _ in range(2):                                       # 2 LSTM layers
        wih_dirs, whh_dirs, b_dirs = [], [], []
        for _dir in range(2):                                # fwd, bwd
            # fused gate layout: columns = [i | f | g | o], each width HIDDEN
            wih_dirs.append(dense(next(ks), (d_in, 4 * HIDDEN), d_in, jnp.bfloat16))
            whh_dirs.append(dense(next(ks), (HIDDEN, 4 * HIDDEN), HIDDEN, jnp.bfloat16))
            b_dirs.append(dense(next(ks), (1, 4 * HIDDEN), HIDDEN, jnp.float32))  # b_ih + b_hh combined
        params["lstm"].append({
            "wih": jnp.stack(wih_dirs),                      # (2, d_in, 4H)
            "whh": jnp.stack(whh_dirs),                      # (2, H, 4H)
            "b": jnp.stack(b_dirs),                          # (2, 1, 4H)
        })
        d_in = 2 * HIDDEN                                    # layer-1 input = concat(fwd, bwd)
    return params


if __name__ == "__main__":
    key = jax.random.PRNGKey(0)
    k_x, k_p = jax.random.split(key)
    x = jax.random.normal(k_x, (B_BATCH, N_FRAMES, C_IN, H_IMG, W_IMG), jnp.float32)
    params = init_params(k_p)

    out = forward(x, params)
    out = jax.block_until_ready(out)
    assert out.shape == (B_BATCH, 1) and out.dtype == jnp.float32
    print("KERNEL_OK")
</pallas_src>

<mosaic_0001>
module attributes {stable_mosaic.version = 11 : i64} {
  func.func @_backbone_kernel(%arg0: memref<2048x27xf32, #tpu.memory_space<vmem>>, %arg1: memref<27x8xbf16, #tpu.memory_space<vmem>>, %arg2: memref<1x8xf32, #tpu.memory_space<vmem>>, %arg3: memref<8x32xbf16, #tpu.memory_space<vmem>>, %arg4: memref<1x32xf32, #tpu.memory_space<vmem>>, %arg5: memref<8x32xf32, #tpu.memory_space<vmem>>) attributes {dimension_semantics = [], scalar_prefetch = 0 : i64, scratch_operands = 0 : i64, tpu.core_type = #tpu.core_type<tc>} {
    %c0 = arith.constant 0 : index
    %c0_0 = arith.constant 0 : index
    %0 = vector.load %arg0[%c0, %c0_0] : memref<2048x27xf32, #tpu.memory_space<vmem>>, vector<2048x27xf32>
    %1 = arith.truncf %0 : vector<2048x27xf32> to vector<2048x27xbf16>
    %c0_1 = arith.constant 0 : index
    %c0_2 = arith.constant 0 : index
    %2 = vector.load %arg1[%c0_1, %c0_2] : memref<27x8xbf16, #tpu.memory_space<vmem>>, vector<27x8xbf16>
    %cst = arith.constant dense<0.000000e+00> : vector<2048x8xf32>
    %3 = tpu.matmul %1, %2, %cst {dimension_numbers = #tpu.dot_dimension_numbers<[1], [0], [0], [1], [0, 0, 1, 1], [], []>} : vector<2048x27xbf16>, vector<27x8xbf16>, vector<2048x8xf32> -> vector<2048x8xf32>
    %c0_3 = arith.constant 0 : index
    %c0_4 = arith.constant 0 : index
    %4 = vector.load %arg2[%c0_3, %c0_4] : memref<1x8xf32, #tpu.memory_space<vmem>>, vector<1x8xf32>
    %5 = vector.broadcast %4 : vector<1x8xf32> to vector<2048x8xf32>
    %6 = arith.addf %3, %5 : vector<2048x8xf32>
    %cst_5 = arith.constant 0.000000e+00 : f32
    %7 = vector.broadcast %cst_5 : f32 to vector<2048x8xf32>
    %8 = arith.maximumf %6, %7 : vector<2048x8xf32>
    %9 = vector.extract_strided_slice %8 {offsets = [0, 0], sizes = [256, 8], strides = [1, 1]} : vector<2048x8xf32> to vector<256x8xf32>
    %cst_6 = arith.constant dense<0.000000e+00> : vector<8xf32>
    %10 = vector.multi_reduction <add>, %9, %cst_6 [0] : vector<256x8xf32> to vector<8xf32>
    %11 = vector.shape_cast %10 : vector<8xf32> to vector<1x8xf32>
    %cst_7 = arith.constant 2.560000e+02 : f32
    %12 = vector.broadcast %cst_7 : f32 to vector<1x8xf32>
    %13 = arith.divf %11, %12 : vector<1x8xf32>
    %14 = vector.extract_strided_slice %8 {offsets = [256, 0], sizes = [256, 8], strides = [1, 1]} : vector<2048x8xf32> to vector<256x8xf32>
    %cst_8 = arith.constant dense<0.000000e+00> : vector<8xf32>
    %15 = vector.multi_reduction <add>, %14, %cst_8 [0] : vector<256x8xf32> to vector<8xf32>
    %16 = vector.shape_cast %15 : vector<8xf32> to vector<1x8xf32>
    %cst_9 = arith.constant 2.560000e+02 : f32
    %17 = vector.broadcast %cst_9 : f32 to vector<1x8xf32>
    %18 = arith.divf %16, %17 : vector<1x8xf32>
    %19 = vector.extract_strided_slice %8 {offsets = [512, 0], sizes = [256, 8], strides = [1, 1]} : vector<2048x8xf32> to vector<256x8xf32>
    %cst_10 = arith.constant dense<0.000000e+00> : vector<8xf32>
    %20 = vector.multi_reduction <add>, %19, %cst_10 [0] : vector<256x8xf32> to vector<8xf32>
    %21 = vector.shape_cast %20 : vector<8xf32> to vector<1x8xf32>
    %cst_11 = arith.constant 2.560000e+02 : f32
    %22 = vector.broadcast %cst_11 : f32 to vector<1x8xf32>
    %23 = arith.divf %21, %22 : vector<1x8xf32>
    %24 = vector.extract_strided_slice %8 {offsets = [768, 0], sizes = [256, 8], strides = [1, 1]} : vector<2048x8xf32> to vector<256x8xf32>
    %cst_12 = arith.constant dense<0.000000e+00> : vector<8xf32>
    %25 = vector.multi_reduction <add>, %24, %cst_12 [0] : vector<256x8xf32> to vector<8xf32>
    %26 = vector.shape_cast %25 : vector<8xf32> to vector<1x8xf32>
    %cst_13 = arith.constant 2.560000e+02 : f32
    %27 = vector.broadcast %cst_13 : f32 to vector<1x8xf32>
    %28 = arith.divf %26, %27 : vector<1x8xf32>
    %29 = vector.extract_strided_slice %8 {offsets = [1024, 0], sizes = [256, 8], strides = [1, 1]} : vector<2048x8xf32> to vector<256x8xf32>
    %cst_14 = arith.constant dense<0.000000e+00> : vector<8xf32>
    %30 = vector.multi_reduction <add>, %29, %cst_14 [0] : vector<256x8xf32> to vector<8xf32>
    %31 = vector.shape_cast %30 : vector<8xf32> to vector<1x8xf32>
    %cst_15 = arith.constant 2.560000e+02 : f32
    %32 = vector.broadcast %cst_15 : f32 to vector<1x8xf32>
    %33 = arith.divf %31, %32 : vector<1x8xf32>
    %34 = vector.extract_strided_slice %8 {offsets = [1280, 0], sizes = [256, 8], strides = [1, 1]} : vector<2048x8xf32> to vector<256x8xf32>
    %cst_16 = arith.constant dense<0.000000e+00> : vector<8xf32>
    %35 = vector.multi_reduction <add>, %34, %cst_16 [0] : vector<256x8xf32> to vector<8xf32>
    %36 = vector.shape_cast %35 : vector<8xf32> to vector<1x8xf32>
    %cst_17 = arith.constant 2.560000e+02 : f32
    %37 = vector.broadcast %cst_17 : f32 to vector<1x8xf32>
    %38 = arith.divf %36, %37 : vector<1x8xf32>
    %39 = vector.extract_strided_slice %8 {offsets = [1536, 0], sizes = [256, 8], strides = [1, 1]} : vector<2048x8xf32> to vector<256x8xf32>
    %cst_18 = arith.constant dense<0.000000e+00> : vector<8xf32>
    %40 = vector.multi_reduction <add>, %39, %cst_18 [0] : vector<256x8xf32> to vector<8xf32>
    %41 = vector.shape_cast %40 : vector<8xf32> to vector<1x8xf32>
    %cst_19 = arith.constant 2.560000e+02 : f32
    %42 = vector.broadcast %cst_19 : f32 to vector<1x8xf32>
    %43 = arith.divf %41, %42 : vector<1x8xf32>
    %44 = vector.extract_strided_slice %8 {offsets = [1792, 0], sizes = [256, 8], strides = [1, 1]} : vector<2048x8xf32> to vector<256x8xf32>
    %cst_20 = arith.constant dense<0.000000e+00> : vector<8xf32>
    %45 = vector.multi_reduction <add>, %44, %cst_20 [0] : vector<256x8xf32> to vector<8xf32>
    %46 = vector.shape_cast %45 : vector<8xf32> to vector<1x8xf32>
    %cst_21 = arith.constant 2.560000e+02 : f32
    %47 = vector.broadcast %cst_21 : f32 to vector<1x8xf32>
    %48 = arith.divf %46, %47 : vector<1x8xf32>
    %49 = tpu.concatenate %13, %18, %23, %28, %33, %38, %43, %48 in 0 : vector<1x8xf32>, vector<1x8xf32>, vector<1x8xf32>, vector<1x8xf32>, vector<1x8xf32>, vector<1x8xf32>, vector<1x8xf32>, vector<1x8xf32> -> vector<8x8xf32>
    %50 = arith.truncf %49 : vector<8x8xf32> to vector<8x8xbf16>
    %c0_22 = arith.constant 0 : index
    %c0_23 = arith.constant 0 : index
    %51 = vector.load %arg3[%c0_22, %c0_23] : memref<8x32xbf16, #tpu.memory_space<vmem>>, vector<8x32xbf16>
    %cst_24 = arith.constant dense<0.000000e+00> : vector<8x32xf32>
    %52 = tpu.matmul %50, %51, %cst_24 {dimension_numbers = #tpu.dot_dimension_numbers<[1], [0], [0], [1], [0, 0, 1, 1], [], []>} : vector<8x8xbf16>, vector<8x32xbf16>, vector<8x32xf32> -> vector<8x32xf32>
    %c0_25 = arith.constant 0 : index
    %c0_26 = arith.constant 0 : index
    %53 = vector.load %arg4[%c0_25, %c0_26] : memref<1x32xf32, #tpu.memory_space<vmem>>, vector<1x32xf32>
    %54 = vector.broadcast %53 : vector<1x32xf32> to vector<8x32xf32>
    %55 = arith.addf %52, %54 : vector<8x32xf32>
    %cst_27 = arith.constant 0.000000e+00 : f32
    %56 = vector.broadcast %cst_27 : f32 to vector<8x32xf32>
    %57 = arith.maximumf %55, %56 : vector<8x32xf32>
    %c0_28 = arith.constant 0 : index
    %c0_29 = arith.constant 0 : index
    %58 = vector.load %arg5[%c0_28, %c0_29] : memref<8x32xf32, #tpu.memory_space<vmem>>, vector<8x32xf32>
    tpu.vector_store %arg5[%c0_28, %c0_29], %57 {strides = array<i32>} : memref<8x32xf32, #tpu.memory_space<vmem>>, vector<8x32xf32>,
    return
  }
}

</mosaic_0001>

<llo_original>
// kernel: tpu_custom_call.1
$region0: #{tpu_custom_call.1}
  #allocation0 [shape = 'u32[]', space=smem, size = 0x4, offset = 0x4, fixed_abs, tag = 'smem constant byte address 0x4 - core index']
  #allocation1 [shape = 'u32[144,128]{1,0:T(1,128)}', space=vmem, size = 0x12000, scoped, tag = 'internal scratch']
  %s0 = inlined_call_operand.vmem [shape: f32[2048,27], index: 0, kind: input, shape index: {}]
  %s1 = inlined_call_operand.vmem [shape: bf16[27,8], index: 1, kind: input, shape index: {}]
  %s2 = inlined_call_operand.vmem [shape: f32[1,8], index: 2, kind: input, shape index: {}]
  %s3 = inlined_call_operand.vmem [shape: bf16[8,32], index: 3, kind: input, shape index: {}]
  %s4 = inlined_call_operand.vmem [shape: f32[1,32], index: 4, kind: input, shape index: {}]
  %s5 = inlined_call_operand.hbm [shape: f32[8,32], index: 5, kind: output, shape index: {}]
  %s6 = sld [smem:[#allocation0]]
  $region30: #{tpu_custom_call.1} parent=0
    _
  %s8 = ssub.s32 1, %s6
  %s9 = scalar_select 0, %s8, %s6
  $region1: #{tpu_custom_call.1} parent=0
    #allocation2 [shape = 'u8[4096]{0}', space=vmem, size = 0x1000, scoped, tag = 'output window, operand 0, single buffered']
    #allocation3 [shape = 's32[1]{0}', space=sflag, size = 0x4, scoped, tag = 'scoped memory for tpu_custom_call.1']
    %10 = vsyncpa [#allocation3], 0
    // Predicated region
    $region2: #{tpu_custom_call.1} parent=1 // pred_check
      _
    $region3: #{tpu_custom_call.1} parent=1 // pred_check_branch
      %12 = sbr.rel (0) target = $region5
    $region4: #{tpu_custom_call.1} parent=1 // pred_region
      _
    $region5: #{tpu_custom_call.1} parent=1 // pred_fallthru
      _
    // Predicated region
    $region6: #{tpu_custom_call.1} parent=1 // pred_check
      _
    $region7: #{tpu_custom_call.1} parent=1 // pred_check_branch
      %14 = sbr.rel (0) target = $region9
    $region8: #{tpu_custom_call.1} parent=1 // pred_region
      _
    $region9: #{tpu_custom_call.1} parent=1 // pred_fallthru
      _
    // Predicated region
    $region10: #{tpu_custom_call.1} parent=1 // pred_check
      _
    $region11: #{tpu_custom_call.1} parent=1 // pred_check_branch
      %16 = sbr.rel (0) target = $region13
    $region12: #{tpu_custom_call.1} parent=1 // pred_region
      _
    $region13: #{tpu_custom_call.1} parent=1 // pred_fallthru
      _
    // Predicated region
    $region14: #{tpu_custom_call.1} parent=1 // pred_check
      _
    $region15: #{tpu_custom_call.1} parent=1 // pred_check_branch
      %18 = sbr.rel (0) target = $region17
    $region16: #{tpu_custom_call.1} parent=1 // pred_region
      _
    $region17: #{tpu_custom_call.1} parent=1 // pred_fallthru
      _
    // Predicated region
    $region18: #{tpu_custom_call.1} parent=1 // pred_check
      _
    $region19: #{tpu_custom_call.1} parent=1 // pred_check_branch
      %20 = sbr.rel (0) target = $region21
    $region20: #{tpu_custom_call.1} parent=1 // pred_region
      _
    $region21: #{tpu_custom_call.1} parent=1 // pred_fallthru
      _
    %v22 = vld [vmem:[%s0] sm:$0xff]
    %v23 = vld [vmem:[%s0 + $0x8] sm:$0xff]
    %v24 = vld [vmem:[%s0 + $0x10] sm:$0xff]
    %v25 = vld [vmem:[%s0 + $0x18] sm:$0xff]
    %v26 = vld [vmem:[%s0 + $0x20] sm:$0xff]
    %v27 = vld [vmem:[%s0 + $0x28] sm:$0xff]
    %v28 = vld [vmem:[%s0 + $0x30] sm:$0xff]
    %v29 = vld [vmem:[%s0 + $0x38] sm:$0xff]
    %v30 = vld [vmem:[%s0 + $0x40] sm:$0xff]
    %v31 = vld [vmem:[%s0 + $0x48] sm:$0xff]
    %v32 = vld [vmem:[%s0 + $0x50] sm:$0xff]
    %v33 = vld [vmem:[%s0 + $0x58] sm:$0xff]
    %v34 = vld [vmem:[%s0 + $0x60] sm:$0xff]
    %v35 = vld [vmem:[%s0 + $0x68] sm:$0xff]
    %v36 = vld [vmem:[%s0 + $0x70] sm:$0xff]
    %v37 = vld [vmem:[%s0 + $0x78] sm:$0xff]
    %v38 = vld [vmem:[%s0 + $0x80] sm:$0xff]
    %v39 = vld [vmem:[%s0 + $0x88] sm:$0xff]
    %v40 = vld [vmem:[%s0 + $0x90] sm:$0xff]
    %v41 = vld [vmem:[%s0 + $0x98] sm:$0xff]
    %v42 = vld [vmem:[%s0 + $0xa0] sm:$0xff]
    %v43 = vld [vmem:[%s0 + $0xa8] sm:$0xff]
    %v44 = vld [vmem:[%s0 + $0xb0] sm:$0xff]
    %v45 = vld [vmem:[%s0 + $0xb8] sm:$0xff]
    %v46 = vld [vmem:[%s0 + $0xc0] sm:$0xff]
    %v47 = vld [vmem:[%s0 + $0xc8] sm:$0xff]
    %v48 = vld [vmem:[%s0 + $0xd0] sm:$0xff]
    %v49 = vld [vmem:[%s0 + $0xd8] sm:$0xff]
    %v50 = vld [vmem:[%s0 + $0xe0] sm:$0xff]
    %v51 = vld [vmem:[%s0 + $0xe8] sm:$0xff]
    %v52 = vld [vmem:[%s0 + $0xf0] sm:$0xff]
    %v53 = vld [vmem:[%s0 + $0xf8] sm:$0xff]
    %v54 = vld [vmem:[%s0 + $0x100] sm:$0xff]
    %v55 = vld [vmem:[%s0 + $0x108] sm:$0xff]
    %v56 = vld [vmem:[%s0 + $0x110] sm:$0xff]
    %v57 = vld [vmem:[%s0 + $0x118] sm:$0xff]
    %v58 = vld [vmem:[%s0 + $0x120] sm:$0xff]
    %v59 = vld [vmem:[%s0 + $0x128] sm:$0xff]
    %v60 = vld [vmem:[%s0 + $0x130] sm:$0xff]
    %v61 = vld [vmem:[%s0 + $0x138] sm:$0xff]
    %v62 = vld [vmem:[%s0 + $0x140] sm:$0xff]
    %v63 = vld [vmem:[%s0 + $0x148] sm:$0xff]
    %v64 = vld [vmem:[%s0 + $0x150] sm:$0xff]
    %v65 = vld [vmem:[%s0 + $0x158] sm:$0xff]
    %v66 = vld [vmem:[%s0 + $0x160] sm:$0xff]
    %v67 = vld [vmem:[%s0 + $0x168] sm:$0xff]
    %v68 = vld [vmem:[%s0 + $0x170] sm:$0xff]
    %v69 = vld [vmem:[%s0 + $0x178] sm:$0xff]
    %v70 = vld [vmem:[%s0 + $0x180] sm:$0xff]
    %v71 = vld [vmem:[%s0 + $0x188] sm:$0xff]
    %v72 = vld [vmem:[%s0 + $0x190] sm:$0xff]
    %v73 = vld [vmem:[%s0 + $0x198] sm:$0xff]
    %v74 = vld [vmem:[%s0 + $0x1a0] sm:$0xff]
    %v75 = vld [vmem:[%s0 + $0x1a8] sm:$0xff]
    %v76 = vld [vmem:[%s0 + $0x1b0] sm:$0xff]
    %v77 = vld [vmem:[%s0 + $0x1b8] sm:$0xff]
    %v78 = vld [vmem:[%s0 + $0x1c0] sm:$0xff]
    %v79 = vld [vmem:[%s0 + $0x1c8] sm:$0xff]
    %v80 = vld [vmem:[%s0 + $0x1d0] sm:$0xff]
    %v81 = vld [vmem:[%s0 + $0x1d8] sm:$0xff]
    %v82 = vld [vmem:[%s0 + $0x1e0] sm:$0xff]
    %v83 = vld [vmem:[%s0 + $0x1e8] sm:$0xff]
    %v84 = vld [vmem:[%s0 + $0x1f0] sm:$0xff]
    %v85 = vld [vmem:[%s0 + $0x1f8] sm:$0xff]
    %v86 = vld [vmem:[%s0 + $0x200] sm:$0xff]
    %v87 = vld [vmem:[%s0 + $0x208] sm:$0xff]
    %v88 = vld [vmem:[%s0 + $0x210] sm:$0xff]
    %v89 = vld [vmem:[%s0 + $0x218] sm:$0xff]
    %v90 = vld [vmem:[%s0 + $0x220] sm:$0xff]
    %v91 = vld [vmem:[%s0 + $0x228] sm:$0xff]
    %v92 = vld [vmem:[%s0 + $0x230] sm:$0xff]
    %v93 = vld [vmem:[%s0 + $0x238] sm:$0xff]
    %v94 = vld [vmem:[%s0 + $0x240] sm:$0xff]
    %v95 = vld [vmem:[%s0 + $0x248] sm:$0xff]
    %v96 = vld [vmem:[%s0 + $0x250] sm:$0xff]
    %v97 = vld [vmem:[%s0 + $0x258] sm:$0xff]
    %v98 = vld [vmem:[%s0 + $0x260] sm:$0xff]
    %v99 = vld [vmem:[%s0 + $0x268] sm:$0xff]
    %v100 = vld [vmem:[%s0 + $0x270] sm:$0xff]
    %v101 = vld [vmem:[%s0 + $0x278] sm:$0xff]
    %v102 = vld [vmem:[%s0 + $0x280] sm:$0xff]
    %v103 = vld [vmem:[%s0 + $0x288] sm:$0xff]
    %v104 = vld [vmem:[%s0 + $0x290] sm:$0xff]
    %v105 = vld [vmem:[%s0 + $0x298] sm:$0xff]
    %v106 = vld [vmem:[%s0 + $0x2a0] sm:$0xff]
    %v107 = vld [vmem:[%s0 + $0x2a8] sm:$0xff]
    %v108 = vld [vmem:[%s0 + $0x2b0] sm:$0xff]
    %v109 = vld [vmem:[%s0 + $0x2b8] sm:$0xff]
    %v110 = vld [vmem:[%s0 + $0x2c0] sm:$0xff]
    %v111 = vld [vmem:[%s0 + $0x2c8] sm:$0xff]
    %v112 = vld [vmem:[%s0 + $0x2d0] sm:$0xff]
    %v113 = vld [vmem:[%s0 + $0x2d8] sm:$0xff]
    %v114 = vld [vmem:[%s0 + $0x2e0] sm:$0xff]
    %v115 = vld [vmem:[%s0 + $0x2e8] sm:$0xff]
    %v116 = vld [vmem:[%s0 + $0x2f0] sm:$0xff]
    %v117 = vld [vmem:[%s0 + $0x2f8] sm:$0xff]
    %v118 = vld [vmem:[%s0 + $0x300] sm:$0xff]
    %v119 = vld [vmem:[%s0 + $0x308] sm:$0xff]
    %v120 = vld [vmem:[%s0 + $0x310] sm:$0xff]
    %v121 = vld [vmem:[%s0 + $0x318] sm:$0xff]
    %v122 = vld [vmem:[%s0 + $0x320] sm:$0xff]
    %v123 = vld [vmem:[%s0 + $0x328] sm:$0xff]
    %v124 = vld [vmem:[%s0 + $0x330] sm:$0xff]
    %v125 = vld [vmem:[%s0 + $0x338] sm:$0xff]
    %v126 = vld [vmem:[%s0 + $0x340] sm:$0xff]
    %v127 = vld [vmem:[%s0 + $0x348] sm:$0xff]
    %v128 = vld [vmem:[%s0 + $0x350] sm:$0xff]
    %v129 = vld [vmem:[%s0 + $0x358] sm:$0xff]
    %v130 = vld [vmem:[%s0 + $0x360] sm:$0xff]
    %v131 = vld [vmem:[%s0 + $0x368] sm:$0xff]
    %v132 = vld [vmem:[%s0 + $0x370] sm:$0xff]
    %v133 = vld [vmem:[%s0 + $0x378] sm:$0xff]
    %v134 = vld [vmem:[%s0 + $0x380] sm:$0xff]
    %v135 = vld [vmem:[%s0 + $0x388] sm:$0xff]
    %v136 = vld [vmem:[%s0 + $0x390] sm:$0xff]
    %v137 = vld [vmem:[%s0 + $0x398] sm:$0xff]
    %v138 = vld [vmem:[%s0 + $0x3a0] sm:$0xff]
    %v139 = vld [vmem:[%s0 + $0x3a8] sm:$0xff]
    %v140 = vld [vmem:[%s0 + $0x3b0] sm:$0xff]
    %v141 = vld [vmem:[%s0 + $0x3b8] sm:$0xff]
    %v142 = vld [vmem:[%s0 + $0x3c0] sm:$0xff]
    %v143 = vld [vmem:[%s0 + $0x3c8] sm:$0xff]
    %v144 = vld [vmem:[%s0 + $0x3d0] sm:$0xff]
    %v145 = vld [vmem:[%s0 + $0x3d8] sm:$0xff]
    %v146 = vld [vmem:[%s0 + $0x3e0] sm:$0xff]
    %v147 = vld [vmem:[%s0 + $0x3e8] sm:$0xff]
    %v148 = vld [vmem:[%s0 + $0x3f0] sm:$0xff]
    %v149 = vld [vmem:[%s0 + $0x3f8] sm:$0xff]
    %v150 = vld [vmem:[%s0 + $0x400] sm:$0xff]
    %v151 = vld [vmem:[%s0 + $0x408] sm:$0xff]
    %v152 = vld [vmem:[%s0 + $0x410] sm:$0xff]
    %v153 = vld [vmem:[%s0 + $0x418] sm:$0xff]
    %v154 = vld [vmem:[%s0 + $0x420] sm:$0xff]
    %v155 = vld [vmem:[%s0 + $0x428] sm:$0xff]
    %v156 = vld [vmem:[%s0 + $0x430] sm:$0xff]
    %v157 = vld [vmem:[%s0 + $0x438] sm:$0xff]
    %v158 = vld [vmem:[%s0 + $0x440] sm:$0xff]
    %v159 = vld [vmem:[%s0 + $0x448] sm:$0xff]
    %v160 = vld [vmem:[%s0 + $0x450] sm:$0xff]
    %v161 = vld [vmem:[%s0 + $0x458] sm:$0xff]
    %v162 = vld [vmem:[%s0 + $0x460] sm:$0xff]
    %v163 = vld [vmem:[%s0 + $0x468] sm:$0xff]
    %v164 = vld [vmem:[%s0 + $0x470] sm:$0xff]
    %v165 = vld [vmem:[%s0 + $0x478] sm:$0xff]
    %v166 = vld [vmem:[%s0 + $0x480] sm:$0xff]
    %v167 = vld [vmem:[%s0 + $0x488] sm:$0xff]
    %v168 = vld [vmem:[%s0 + $0x490] sm:$0xff]
    %v169 = vld [vmem:[%s0 + $0x498] sm:$0xff]
    %v170 = vld [vmem:[%s0 + $0x4a0] sm:$0xff]
    %v171 = vld [vmem:[%s0 + $0x4a8] sm:$0xff]
    %v172 = vld [vmem:[%s0 + $0x4b0] sm:$0xff]
    %v173 = vld [vmem:[%s0 + $0x4b8] sm:$0xff]
    %v174 = vld [vmem:[%s0 + $0x4c0] sm:$0xff]
    %v175 = vld [vmem:[%s0 + $0x4c8] sm:$0xff]
    %v176 = vld [vmem:[%s0 + $0x4d0] sm:$0xff]
    %v177 = vld [vmem:[%s0 + $0x4d8] sm:$0xff]
    %v178 = vld [vmem:[%s0 + $0x4e0] sm:$0xff]
    %v179 = vld [vmem:[%s0 + $0x4e8] sm:$0xff]
    %v180 = vld [vmem:[%s0 + $0x4f0] sm:$0xff]
    %v181 = vld [vmem:[%s0 + $0x4f8] sm:$0xff]
    %v182 = vld [vmem:[%s0 + $0x500] sm:$0xff]
    %v183 = vld [vmem:[%s0 + $0x508] sm:$0xff]
    %v184 = vld [vmem:[%s0 + $0x510] sm:$0xff]
    %v185 = vld [vmem:[%s0 + $0x518] sm:$0xff]
    %v186 = vld [vmem:[%s0 + $0x520] sm:$0xff]
    %v187 = vld [vmem:[%s0 + $0x528] sm:$0xff]
    %v188 = vld [vmem:[%s0 + $0x530] sm:$0xff]
    %v189 = vld [vmem:[%s0 + $0x538] sm:$0xff]
    %v190 = vld [vmem:[%s0 + $0x540] sm:$0xff]
    %v191 = vld [vmem:[%s0 + $0x548] sm:$0xff]
    %v192 = vld [vmem:[%s0 + $0x550] sm:$0xff]
    %v193 = vld [vmem:[%s0 + $0x558] sm:$0xff]
    %v194 = vld [vmem:[%s0 + $0x560] sm:$0xff]
    %v195 = vld [vmem:[%s0 + $0x568] sm:$0xff]
    %v196 = vld [vmem:[%s0 + $0x570] sm:$0xff]
    %v197 = vld [vmem:[%s0 + $0x578] sm:$0xff]
    %v198 = vld [vmem:[%s0 + $0x580] sm:$0xff]
    %v199 = vld [vmem:[%s0 + $0x588] sm:$0xff]
    %v200 = vld [vmem:[%s0 + $0x590] sm:$0xff]
    %v201 = vld [vmem:[%s0 + $0x598] sm:$0xff]
    %v202 = vld [vmem:[%s0 + $0x5a0] sm:$0xff]
    %v203 = vld [vmem:[%s0 + $0x5a8] sm:$0xff]
    %v204 = vld [vmem:[%s0 + $0x5b0] sm:$0xff]
    %v205 = vld [vmem:[%s0 + $0x5b8] sm:$0xff]
    %v206 = vld [vmem:[%s0 + $0x5c0] sm:$0xff]
    %v207 = vld [vmem:[%s0 + $0x5c8] sm:$0xff]
    %v208 = vld [vmem:[%s0 + $0x5d0] sm:$0xff]
    %v209 = vld [vmem:[%s0 + $0x5d8] sm:$0xff]
    %v210 = vld [vmem:[%s0 + $0x5e0] sm:$0xff]
    %v211 = vld [vmem:[%s0 + $0x5e8] sm:$0xff]
    %v212 = vld [vmem:[%s0 + $0x5f0] sm:$0xff]
    %v213 = vld [vmem:[%s0 + $0x5f8] sm:$0xff]
    %v214 = vld [vmem:[%s0 + $0x600] sm:$0xff]
    %v215 = vld [vmem:[%s0 + $0x608] sm:$0xff]
    %v216 = vld [vmem:[%s0 + $0x610] sm:$0xff]
    %v217 = vld [vmem:[%s0 + $0x618] sm:$0xff]
    %v218 = vld [vmem:[%s0 + $0x620] sm:$0xff]
    %v219 = vld [vmem:[%s0 + $0x628] sm:$0xff]
    %v220 = vld [vmem:[%s0 + $0x630] sm:$0xff]
    %v221 = vld [vmem:[%s0 + $0x638] sm:$0xff]
    %v222 = vld [vmem:[%s0 + $0x640] sm:$0xff]
    %v223 = vld [vmem:[%s0 + $0x648] sm:$0xff]
    %v224 = vld [vmem:[%s0 + $0x650] sm:$0xff]
    %v225 = vld [vmem:[%s0 + $0x658] sm:$0xff]
    %v226 = vld [vmem:[%s0 + $0x660] sm:$0xff]
    %v227 = vld [vmem:[%s0 + $0x668] sm:$0xff]
    %v228 = vld [vmem:[%s0 + $0x670] sm:$0xff]
    %v229 = vld [vmem:[%s0 + $0x678] sm:$0xff]
    %v230 = vld [vmem:[%s0 + $0x680] sm:$0xff]
    %v231 = vld [vmem:[%s0 + $0x688] sm:$0xff]
    %v232 = vld [vmem:[%s0 + $0x690] sm:$0xff]
    %v233 = vld [vmem:[%s0 + $0x698] sm:$0xff]
    %v234 = vld [vmem:[%s0 + $0x6a0] sm:$0xff]
    %v235 = vld [vmem:[%s0 + $0x6a8] sm:$0xff]
    %v236 = vld [vmem:[%s0 + $0x6b0] sm:$0xff]
    %v237 = vld [vmem:[%s0 + $0x6b8] sm:$0xff]
    %v238 = vld [vmem:[%s0 + $0x6c0] sm:$0xff]
    %v239 = vld [vmem:[%s0 + $0x6c8] sm:$0xff]
    %v240 = vld [vmem:[%s0 + $0x6d0] sm:$0xff]
    %v241 = vld [vmem:[%s0 + $0x6d8] sm:$0xff]
    %v242 = vld [vmem:[%s0 + $0x6e0] sm:$0xff]
    %v243 = vld [vmem:[%s0 + $0x6e8] sm:$0xff]
    %v244 = vld [vmem:[%s0 + $0x6f0] sm:$0xff]
    %v245 = vld [vmem:[%s0 + $0x6f8] sm:$0xff]
    %v246 = vld [vmem:[%s0 + $0x700] sm:$0xff]
    %v247 = vld [vmem:[%s0 + $0x708] sm:$0xff]
    %v248 = vld [vmem:[%s0 + $0x710] sm:$0xff]
    %v249 = vld [vmem:[%s0 + $0x718] sm:$0xff]
    %v250 = vld [vmem:[%s0 + $0x720] sm:$0xff]
    %v251 = vld [vmem:[%s0 + $0x728] sm:$0xff]
    %v252 = vld [vmem:[%s0 + $0x730] sm:$0xff]
    %v253 = vld [vmem:[%s0 + $0x738] sm:$0xff]
    %v254 = vld [vmem:[%s0 + $0x740] sm:$0xff]
    %v255 = vld [vmem:[%s0 + $0x748] sm:$0xff]
    %v256 = vld [vmem:[%s0 + $0x750] sm:$0xff]
    %v257 = vld [vmem:[%s0 + $0x758] sm:$0xff]
    %v258 = vld [vmem:[%s0 + $0x760] sm:$0xff]
    %v259 = vld [vmem:[%s0 + $0x768] sm:$0xff]
    %v260 = vld [vmem:[%s0 + $0x770] sm:$0xff]
    %v261 = vld [vmem:[%s0 + $0x778] sm:$0xff]
    %v262 = vld [vmem:[%s0 + $0x780] sm:$0xff]
    %v263 = vld [vmem:[%s0 + $0x788] sm:$0xff]
    %v264 = vld [vmem:[%s0 + $0x790] sm:$0xff]
    %v265 = vld [vmem:[%s0 + $0x798] sm:$0xff]
    %v266 = vld [vmem:[%s0 + $0x7a0] sm:$0xff]
    %v267 = vld [vmem:[%s0 + $0x7a8] sm:$0xff]
    %v268 = vld [vmem:[%s0 + $0x7b0] sm:$0xff]
    %v269 = vld [vmem:[%s0 + $0x7b8] sm:$0xff]
    %v270 = vld [vmem:[%s0 + $0x7c0] sm:$0xff]
    %v271 = vld [vmem:[%s0 + $0x7c8] sm:$0xff]
    %v272 = vld [vmem:[%s0 + $0x7d0] sm:$0xff]
    %v273 = vld [vmem:[%s0 + $0x7d8] sm:$0xff]
    %v274 = vld [vmem:[%s0 + $0x7e0] sm:$0xff]
    %v275 = vld [vmem:[%s0 + $0x7e8] sm:$0xff]
    %v276 = vld [vmem:[%s0 + $0x7f0] sm:$0xff]
    %v277 = vld [vmem:[%s0 + $0x7f8] sm:$0xff]
    %v278 = vpack.c.bf16 %v23, %v22
    %v279 = vpack.c.bf16 %v25, %v24
    %v280 = vpack.c.bf16 %v27, %v26
    %v281 = vpack.c.bf16 %v29, %v28
    %v282 = vpack.c.bf16 %v31, %v30
    %v283 = vpack.c.bf16 %v33, %v32
    %v284 = vpack.c.bf16 %v35, %v34
    %v285 = vpack.c.bf16 %v37, %v36
    %v286 = vpack.c.bf16 %v39, %v38
    %v287 = vpack.c.bf16 %v41, %v40
    %v288 = vpack.c.bf16 %v43, %v42
    %v289 = vpack.c.bf16 %v45, %v44
    %v290 = vpack.c.bf16 %v47, %v46
    %v291 = vpack.c.bf16 %v49, %v48
    %v292 = vpack.c.bf16 %v51, %v50
    %v293 = vpack.c.bf16 %v53, %v52
    %v294 = vpack.c.bf16 %v55, %v54
    %v295 = vpack.c.bf16 %v57, %v56
    %v296 = vpack.c.bf16 %v59, %v58
    %v297 = vpack.c.bf16 %v61, %v60
    %v298 = vpack.c.bf16 %v63, %v62
    %v299 = vpack.c.bf16 %v65, %v64
    %v300 = vpack.c.bf16 %v67, %v66
    %v301 = vpack.c.bf16 %v69, %v68
    %v302 = vpack.c.bf16 %v71, %v70
    %v303 = vpack.c.bf16 %v73, %v72
    %v304 = vpack.c.bf16 %v75, %v74
    %v305 = vpack.c.bf16 %v77, %v76
    %v306 = vpack.c.bf16 %v79, %v78
    %v307 = vpack.c.bf16 %v81, %v80
    %v308 = vpack.c.bf16 %v83, %v82
    %v309 = vpack.c.bf16 %v85, %v84
    %v310 = vpack.c.bf16 %v87, %v86
    %v311 = vpack.c.bf16 %v89, %v88
    %v312 = vpack.c.bf16 %v91, %v90
    %v313 = vpack.c.bf16 %v93, %v92
    %v314 = vpack.c.bf16 %v95, %v94
    %v315 = vpack.c.bf16 %v97, %v96
    %v316 = vpack.c.bf16 %v99, %v98
    %v317 = vpack.c.bf16 %v101, %v100
    %v318 = vpack.c.bf16 %v103, %v102
    %v319 = vpack.c.bf16 %v105, %v104
    %v320 = vpack.c.bf16 %v107, %v106
    %v321 = vpack.c.bf16 %v109, %v108
    %v322 = vpack.c.bf16 %v111, %v110
    %v323 = vpack.c.bf16 %v113, %v112
    %v324 = vpack.c.bf16 %v115, %v114
    %v325 = vpack.c.bf16 %v117, %v116
    %v326 = vpack.c.bf16 %v119, %v118
    %v327 = vpack.c.bf16 %v121, %v120
    %v328 = vpack.c.bf16 %v123, %v122
    %v329 = vpack.c.bf16 %v125, %v124
    %v330 = vpack.c.bf16 %v127, %v126
    %v331 = vpack.c.bf16 %v129, %v128
    %v332 = vpack.c.bf16 %v131, %v130
    %v333 = vpack.c.bf16 %v133, %v132
    %v334 = vpack.c.bf16 %v135, %v134
    %v335 = vpack.c.bf16 %v137, %v136
    %v336 = vpack.c.bf16 %v139, %v138
    %v337 = vpack.c.bf16 %v141, %v140
    %v338 = vpack.c.bf16 %v143, %v142
    %v339 = vpack.c.bf16 %v145, %v144
    %v340 = vpack.c.bf16 %v147, %v146
    %v341 = vpack.c.bf16 %v149, %v148
    %v342 = vpack.c.bf16 %v151, %v150
    %v343 = vpack.c.bf16 %v153, %v152
    %v344 = vpack.c.bf16 %v155, %v154
    %v345 = vpack.c.bf16 %v157, %v156
    %v346 = vpack.c.bf16 %v159, %v158
    %v347 = vpack.c.bf16 %v161, %v160
    %v348 = vpack.c.bf16 %v163, %v162
    %v349 = vpack.c.bf16 %v165, %v164
    %v350 = vpack.c.bf16 %v167, %v166
    %v351 = vpack.c.bf16 %v169, %v168
    %v352 = vpack.c.bf16 %v171, %v170
    %v353 = vpack.c.bf16 %v173, %v172
    %v354 = vpack.c.bf16 %v175, %v174
    %v355 = vpack.c.bf16 %v177, %v176
    %v356 = vpack.c.bf16 %v179, %v178
    %v357 = vpack.c.bf16 %v181, %v180
    %v358 = vpack.c.bf16 %v183, %v182
    %v359 = vpack.c.bf16 %v185, %v184
    %v360 = vpack.c.bf16 %v187, %v186
    %v361 = vpack.c.bf16 %v189, %v188
    %v362 = vpack.c.bf16 %v191, %v190
    %v363 = vpack.c.bf16 %v193, %v192
    %v364 = vpack.c.bf16 %v195, %v194
    %v365 = vpack.c.bf16 %v197, %v196
    %v366 = vpack.c.bf16 %v199, %v198
    %v367 = vpack.c.bf16 %v201, %v200
    %v368 = vpack.c.bf16 %v203, %v202
    %v369 = vpack.c.bf16 %v205, %v204
    %v370 = vpack.c.bf16 %v207, %v206
    %v371 = vpack.c.bf16 %v209, %v208
    %v372 = vpack.c.bf16 %v211, %v210
    %v373 = vpack.c.bf16 %v213, %v212
    %v374 = vpack.c.bf16 %v215, %v214
    %v375 = vpack.c.bf16 %v217, %v216
    %v376 = vpack.c.bf16 %v219, %v218
    %v377 = vpack.c.bf16 %v221, %v220
    %v378 = vpack.c.bf16 %v223, %v222
    %v379 = vpack.c.bf16 %v225, %v224
    %v380 = vpack.c.bf16 %v227, %v226
    %v381 = vpack.c.bf16 %v229, %v228
    %v382 = vpack.c.bf16 %v231, %v230
    %v383 = vpack.c.bf16 %v233, %v232
    %v384 = vpack.c.bf16 %v235, %v234
    %v385 = vpack.c.bf16 %v237, %v236
    %v386 = vpack.c.bf16 %v239, %v238
    %v387 = vpack.c.bf16 %v241, %v240
    %v388 = vpack.c.bf16 %v243, %v242
    %v389 = vpack.c.bf16 %v245, %v244
    %v390 = vpack.c.bf16 %v247, %v246
    %v391 = vpack.c.bf16 %v249, %v248
    %v392 = vpack.c.bf16 %v251, %v250
    %v393 = vpack.c.bf16 %v253, %v252
    %v394 = vpack.c.bf16 %v255, %v254
    %v395 = vpack.c.bf16 %v257, %v256
    %v396 = vpack.c.bf16 %v259, %v258
    %v397 = vpack.c.bf16 %v261, %v260
    %v398 = vpack.c.bf16 %v263, %v262
    %v399 = vpack.c.bf16 %v265, %v264
    %v400 = vpack.c.bf16 %v267, %v266
    %v401 = vpack.c.bf16 %v269, %v268
    %v402 = vpack.c.bf16 %v271, %v270
    %v403 = vpack.c.bf16 %v273, %v272
    %v404 = vpack.c.bf16 %v275, %v274
    %v405 = vpack.c.bf16 %v277, %v276
    %v406 = vld [vmem:[%s1] sm:$0xf]
    %v407 = vld [vmem:[%s1 + $0x4] sm:$0xf]
    %v408 = vld [vmem:[%s1 + $0x8] sm:$0xf]
    %v409 = vld [vmem:[%s1 + $0xc] sm:$0x3]
    %v410 = vld [vmem:[%s2] sm:$0x1]
    %v412 = vlaneseq
    %v413 = vshrl.u32 %v412, 7
    %v414 = vsub.s32 0, %v413
    %v415 = vrot.slane %v410, %v414
    %v421 = vunpack.c.l.b16 %v406
    %v422 = vunpack.c.l.b16 %v407
    %v423 = vunpack.c.l.b16 %v408
    %v424 = vunpack.c.l.b16 %v409
    %v425 = vpack.c.b16 %v422, %v421
    %v426 = vpack.c.b16 %v424, %v423
    %vm428 = vcmask 220160
    %v430 = vsel %vm428, %v278, 0
    %v433 = vsel %vm428, %v279, 0
    %v436 = vsel %vm428, %v280, 0
    %v439 = vsel %vm428, %v281, 0
    %v442 = vsel %vm428, %v282, 0
    %v445 = vsel %vm428, %v283, 0
    %v448 = vsel %vm428, %v284, 0
    %v451 = vsel %vm428, %v285, 0
    %v454 = vsel %vm428, %v286, 0
    %v457 = vsel %vm428, %v287, 0
    %v460 = vsel %vm428, %v288, 0
    %v463 = vsel %vm428, %v289, 0
    %v466 = vsel %vm428, %v290, 0
    %v469 = vsel %vm428, %v291, 0
    %v472 = vsel %vm428, %v292, 0
    %v475 = vsel %vm428, %v293, 0
    %v478 = vsel %vm428, %v294, 0
    %v481 = vsel %vm428, %v295, 0
    %v484 = vsel %vm428, %v296, 0
    %v487 = vsel %vm428, %v297, 0
    %v490 = vsel %vm428, %v298, 0
    %v493 = vsel %vm428, %v299, 0
    %v496 = vsel %vm428, %v300, 0
    %v499 = vsel %vm428, %v301, 0
    %v502 = vsel %vm428, %v302, 0
    %v505 = vsel %vm428, %v303, 0
    %v508 = vsel %vm428, %v304, 0
    %v511 = vsel %vm428, %v305, 0
    %v514 = vsel %vm428, %v306, 0
    %v517 = vsel %vm428, %v307, 0
    %v520 = vsel %vm428, %v308, 0
    %v523 = vsel %vm428, %v309, 0
    %v526 = vsel %vm428, %v310, 0
    %v529 = vsel %vm428, %v311, 0
    %v532 = vsel %vm428, %v312, 0
    %v535 = vsel %vm428, %v313, 0
    %v538 = vsel %vm428, %v314, 0
    %v541 = vsel %vm428, %v315, 0
    %v544 = vsel %vm428, %v316, 0
    %v547 = vsel %vm428, %v317, 0
    %v550 = vsel %vm428, %v318, 0
    %v553 = vsel %vm428, %v319, 0
    %v556 = vsel %vm428, %v320, 0
    %v559 = vsel %vm428, %v321, 0
    %v562 = vsel %vm428, %v322, 0
    %v565 = vsel %vm428, %v323, 0
    %v568 = vsel %vm428, %v324, 0
    %v571 = vsel %vm428, %v325, 0
    %v574 = vsel %vm428, %v326, 0
    %v577 = vsel %vm428, %v327, 0
    %v580 = vsel %vm428, %v328, 0
    %v583 = vsel %vm428, %v329, 0
    %v586 = vsel %vm428, %v330, 0
    %v589 = vsel %vm428, %v331, 0
    %v592 = vsel %vm428, %v332, 0
    %v595 = vsel %vm428, %v333, 0
    %v598 = vsel %vm428, %v334, 0
    %v601 = vsel %vm428, %v335, 0
    %v604 = vsel %vm428, %v336, 0
    %v607 = vsel %vm428, %v337, 0
    %v610 = vsel %vm428, %v338, 0
    %v613 = vsel %vm428, %v339, 0
    %v616 = vsel %vm428, %v340, 0
    %v619 = vsel %vm428, %v341, 0
    %v622 = vsel %vm428, %v342, 0
    %v625 = vsel %vm428, %v343, 0
    %v628 = vsel %vm428, %v344, 0
    %v631 = vsel %vm428, %v345, 0
    %v634 = vsel %vm428, %v346, 0
    %v637 = vsel %vm428, %v347, 0
    %v640 = vsel %vm428, %v348, 0
    %v643 = vsel %vm428, %v349, 0
    %v646 = vsel %vm428, %v350, 0
    %v649 = vsel %vm428, %v351, 0
    %v652 = vsel %vm428, %v352, 0
    %v655 = vsel %vm428, %v353, 0
    %v658 = vsel %vm428, %v354, 0
    %v661 = vsel %vm428, %v355, 0
    %v664 = vsel %vm428, %v356, 0
    %v667 = vsel %vm428, %v357, 0
    %v670 = vsel %vm428, %v358, 0
    %v673 = vsel %vm428, %v359, 0
    %v676 = vsel %vm428, %v360, 0
    %v679 = vsel %vm428, %v361, 0
    %v682 = vsel %vm428, %v362, 0
    %v685 = vsel %vm428, %v363, 0
    %v688 = vsel %vm428, %v364, 0
    %v691 = vsel %vm428, %v365, 0
    %v694 = vsel %vm428, %v366, 0
    %v697 = vsel %vm428, %v367, 0
    %v700 = vsel %vm428, %v368, 0
    %v703 = vsel %vm428, %v369, 0
    %v706 = vsel %vm428, %v370, 0
    %v709 = vsel %vm428, %v371, 0
    %v712 = vsel %vm428, %v372, 0
    %v715 = vsel %vm428, %v373, 0
    %v718 = vsel %vm428, %v374, 0
    %v721 = vsel %vm428, %v375, 0
    %v724 = vsel %vm428, %v376, 0
    %v727 = vsel %vm428, %v377, 0
    %v730 = vsel %vm428, %v378, 0
    %v733 = vsel %vm428, %v379, 0
    %v736 = vsel %vm428, %v380, 0
    %v739 = vsel %vm428, %v381, 0
    %v742 = vsel %vm428, %v382, 0
    %v745 = vsel %vm428, %v383, 0
    %v748 = vsel %vm428, %v384, 0
    %v751 = vsel %vm428, %v385, 0
    %v754 = vsel %vm428, %v386, 0
    %v757 = vsel %vm428, %v387, 0
    %v760 = vsel %vm428, %v388, 0
    %v763 = vsel %vm428, %v389, 0
    %v766 = vsel %vm428, %v390, 0
    %v769 = vsel %vm428, %v391, 0
    %v772 = vsel %vm428, %v392, 0
    %v775 = vsel %vm428, %v393, 0
    %v778 = vsel %vm428, %v394, 0
    %v781 = vsel %vm428, %v395, 0
    %v784 = vsel %vm428, %v396, 0
    %v787 = vsel %vm428, %v397, 0
    %v790 = vsel %vm428, %v398, 0
    %v793 = vsel %vm428, %v399, 0
    %v796 = vsel %vm428, %v400, 0
    %v799 = vsel %vm428, %v401, 0
    %v802 = vsel %vm428, %v402, 0
    %v805 = vsel %vm428, %v403, 0
    %v808 = vsel %vm428, %v404, 0
    %v811 = vsel %vm428, %v405, 0
    %vm813 = vcmask 1044480
    %vm814 = vcmask 1045504
    %v815 = vsel %vm813, 4294967295, 65535
    %v816 = vsel %vm814, %v815, 0
    %v818 = vand.u32 %v426, %v816
    %820 = vmatprep.subr.bf16.mxu0 0
    %821 = vmatpush1.bf16.msra.mxu0 %v425
    %822 = vmatprep.subr.bf16.mxu0 0
    %823 = vmatpush1.bf16.msra.mxu0 %v818
    %824 = vmatprep.subr.bf16.mxu0 0
    %825 = vmatpush1.bf16.msra.mxu0 0
    %826 = vmatprep.subr.bf16.mxu0 0
    %827 = vmatpush1.bf16.msra.mxu0 0
    %828 = vmatprep.subr.bf16.mxu0 0
    %829 = vmatpush1.bf16.msra.mxu0 0
    %830 = vmatprep.subr.bf16.mxu0 0
    %831 = vmatpush1.bf16.msra.mxu0 0
    %832 = vmatprep.subr.bf16.mxu0 0
    %833 = vmatpush1.bf16.msra.mxu0 0
    %834 = vmatprep.subr.bf16.mxu0 0
    %835 = vmatpush1.bf16.msra.mxu0 0
    %836 = vmatprep.subr.bf16.mxu0 0
    %837 = vmatpush1.bf16.msra.mxu0 0
    %838 = vmatprep.subr.bf16.mxu0 0
    %839 = vmatpush1.bf16.msra.mxu0 0
    %840 = vmatprep.subr.bf16.mxu0 0
    %841 = vmatpush1.bf16.msra.mxu0 0
    %842 = vmatprep.subr.bf16.mxu0 0
    %843 = vmatpush1.bf16.msra.mxu0 0
    %844 = vmatprep.subr.bf16.mxu0 0
    %845 = vmatpush1.bf16.msra.mxu0 0
    %846 = vmatprep.subr.bf16.mxu0 0
    %847 = vmatpush1.bf16.msra.mxu0 0
    %848 = vmatprep.subr.bf16.mxu0 0
    %849 = vmatpush1.bf16.msra.mxu0 0
    %850 = vmatprep.subr.bf16.mxu0 0
    %851 = vmatpush1.bf16.msra.mxu0 0
    %852 = vmatprep.mubr.bf16.mxu0 0
    %853 = vmatmul.mubr.bf16.gmra.mrb[0].mxu0 %v430
    %v854 = vpop.f32.mrb[0].mxu0
    %v855 = vadd.f32 %v415, %v854
    %v856 = vpop.f32.mrb[0].mxu0
    %v857 = vpop.f32.mrb[0].mxu0
    %v858 = vadd.f32 %v415, %v857
    %v859 = vpop.f32.mrb[0].mxu0
    %860 = vmatprep.mubr.bf16.mxu0 0
    %861 = vmatmul.mubr.bf16.gmra.mrb[0].mxu0 %v433
    %v862 = vpop.f32.mrb[0].mxu0
    %v863 = vadd.f32 %v415, %v862
    %v864 = vpop.f32.mrb[0].mxu0
    %v865 = vpop.f32.mrb[0].mxu0
    %v866 = vadd.f32 %v415, %v865
    %v867 = vpop.f32.mrb[0].mxu0
    %868 = vmatprep.mubr.bf16.mxu0 0
    %869 = vmatmul.mubr.bf16.gmra.mrb[0].mxu0 %v436
    %v870 = vpop.f32.mrb[0].mxu0
    %v871 = vadd.f32 %v415, %v870
    %v872 = vpop.f32.mrb[0].mxu0
    %v873 = vpop.f32.mrb[0].mxu0
    %v874 = vadd.f32 %v415, %v873
    %v875 = vpop.f32.mrb[0].mxu0
    %876 = vmatprep.mubr.bf16.mxu0 0
    %877 = vmatmul.mubr.bf16.gmra.mrb[0].mxu0 %v439
    %v878 = vpop.f32.mrb[0].mxu0
    %v879 = vadd.f32 %v415, %v878
    %v880 = vpop.f32.mrb[0].mxu0
    %v881 = vpop.f32.mrb[0].mxu0
    %v882 = vadd.f32 %v415, %v881
    %v883 = vpop.f32.mrb[0].mxu0
    %884 = vmatprep.mubr.bf16.mxu0 0
    %885 = vmatmul.mubr.bf16.gmra.mrb[0].mxu0 %v442
    %v886 = vpop.f32.mrb[0].mxu0
    %v887 = vadd.f32 %v415, %v886
    %v888 = vpop.f32.mrb[0].mxu0
    %v889 = vpop.f32.mrb[0].mxu0
    %v890 = vadd.f32 %v415, %v889
    %v891 = vpop.f32.mrb[0].mxu0
    %892 = vmatprep.mubr.bf16.mxu0 0
    %893 = vmatmul.mubr.bf16.gmra.mrb[0].mxu0 %v445
    %v894 = vpop.f32.mrb[0].mxu0
    %v895 = vadd.f32 %v415, %v894
    %v896 = vpop.f32.mrb[0].mxu0
    %v897 = vpop.f32.mrb[0].mxu0
    %v898 = vadd.f32 %v415, %v897
    %v899 = vpop.f32.mrb[0].mxu0
    %900 = vmatprep.mubr.bf16.mxu0 0
    %901 = vmatmul.mubr.bf16.gmra.mrb[0].mxu0 %v448
    %v902 = vpop.f32.mrb[0].mxu0
    %v903 = vadd.f32 %v415, %v902
    %v904 = vpop.f32.mrb[0].mxu0
    %v905 = vpop.f32.mrb[0].mxu0
    %v906 = vadd.f32 %v415, %v905
    %v907 = vpop.f32.mrb[0].mxu0
    %908 = vmatprep.mubr.bf16.mxu0 0
    %909 = vmatmul.mubr.bf16.gmra.mrb[0].mxu0 %v451
    %v910 = vpop.f32.mrb[0].mxu0
    %v911 = vadd.f32 %v415, %v910
    %v912 = vpop.f32.mrb[0].mxu0
    %v913 = vpop.f32.mrb[0].mxu0
    %v914 = vadd.f32 %v415, %v913
    %v915 = vpop.f32.mrb[0].mxu0
    %916 = vmatprep.mubr.bf16.mxu0 0
    %917 = vmatmul.mubr.bf16.gmra.mrb[0].mxu0 %v454
    %v918 = vpop.f32.mrb[0].mxu0
    %v919 = vadd.f32 %v415, %v918
    %v920 = vpop.f32.mrb[0].mxu0
    %v921 = vpop.f32.mrb[0].mxu0
    %v922 = vadd.f32 %v415, %v921
    %v923 = vpop.f32.mrb[0].mxu0
    %924 = vmatprep.mubr.bf16.mxu0 0
    %925 = vmatmul.mubr.bf16.gmra.mrb[0].mxu0 %v457
    %v926 = vpop.f32.mrb[0].mxu0
    %v927 = vadd.f32 %v415, %v926
    %v928 = vpop.f32.mrb[0].mxu0
    %v929 = vpop.f32.mrb[0].mxu0
    %v930 = vadd.f32 %v415, %v929
    %v931 = vpop.f32.mrb[0].mxu0
    %932 = vmatprep.mubr.bf16.mxu0 0
    %933 = vmatmul.mubr.bf16.gmra.mrb[0].mxu0 %v460
    %v934 = vpop.f32.mrb[0].mxu0
    %v935 = vadd.f32 %v415, %v934
    %v936 = vpop.f32.mrb[0].mxu0
    %v937 = vpop.f32.mrb[0].mxu0
    %v938 = vadd.f32 %v415, %v937
    %v939 = vpop.f32.mrb[0].mxu0
    %940 = vmatprep.mubr.bf16.mxu0 0
    %941 = vmatmul.mubr.bf16.gmra.mrb[0].mxu0 %v463
    %v942 = vpop.f32.mrb[0].mxu0
    %v943 = vadd.f32 %v415, %v942
    %v944 = vpop.f32.mrb[0].mxu0
    %v945 = vpop.f32.mrb[0].mxu0
    %v946 = vadd.f32 %v415, %v945
    %v947 = vpop.f32.mrb[0].mxu0
    %948 = vmatprep.mubr.bf16.mxu0 0
    %949 = vmatmul.mubr.bf16.gmra.mrb[0].mxu0 %v466
    %v950 = vpop.f32.mrb[0].mxu0
    %v951 = vadd.f32 %v415, %v950
    %v952 = vpop.f32.mrb[0].mxu0
    %v953 = vpop.f32.mrb[0].mxu0
    %v954 = vadd.f32 %v415, %v953
    %v955 = vpop.f32.mrb[0].mxu0
    %956 = vmatprep.mubr.bf16.mxu0 0
    %957 = vmatmul.mubr.bf16.gmra.mrb[0].mxu0 %v469
    %v958 = vpop.f32.mrb[0].mxu0
    %v959 = vadd.f32 %v415, %v958
    %v960 = vpop.f32.mrb[0].mxu0
    %v961 = vpop.f32.mrb[0].mxu0
    %v962 = vadd.f32 %v415, %v961
    %v963 = vpop.f32.mrb[0].mxu0
    %964 = vmatprep.mubr.bf16.mxu0 0
    %965 = vmatmul.mubr.bf16.gmra.mrb[0].mxu0 %v472
    %v966 = vpop.f32.mrb[0].mxu0
    %v967 = vadd.f32 %v415, %v966
    %v968 = vpop.f32.mrb[0].mxu0
    %v969 = vpop.f32.mrb[0].mxu0
    %v970 = vadd.f32 %v415, %v969
    %v971 = vpop.f32.mrb[0].mxu0
    %972 = vmatprep.mubr.bf16.mxu0 0
    %973 = vmatmul.mubr.bf16.gmra.mrb[0].mxu0 %v475
    %v974 = vpop.f32.mrb[0].mxu0
    %v975 = vadd.f32 %v415, %v974
    %v976 = vpop.f32.mrb[0].mxu0
    %v977 = vpop.f32.mrb[0].mxu0
    %v978 = vadd.f32 %v415, %v977
    %v979 = vpop.f32.mrb[0].mxu0
    %980 = vmatprep.mubr.bf16.mxu0 0
    %981 = vmatmul.mubr.bf16.gmra.mrb[0].mxu0 %v478
    %v982 = vpop.f32.mrb[0].mxu0
    %v983 = vadd.f32 %v415, %v982
    %v984 = vpop.f32.mrb[0].mxu0
    %v985 = vpop.f32.mrb[0].mxu0
    %v986 = vadd.f32 %v415, %v985
    %v987 = vpop.f32.mrb[0].mxu0
    %988 = vmatprep.mubr.bf16.mxu0 0
    %989 = vmatmul.mubr.bf16.gmra.mrb[0].mxu0 %v481
    %v990 = vpop.f32.mrb[0].mxu0
    %v991 = vadd.f32 %v415, %v990
    %v992 = vpop.f32.mrb[0].mxu0
    %v993 = vpop.f32.mrb[0].mxu0
    %v994 = vadd.f32 %v415, %v993
    %v995 = vpop.f32.mrb[0].mxu0
    %996 = vmatprep.mubr.bf16.mxu0 0
    %997 = vmatmul.mubr.bf16.gmra.mrb[0].mxu0 %v484
    %v998 = vpop.f32.mrb[0].mxu0
    %v999 = vadd.f32 %v415, %v998
    %v1000 = vpop.f32.mrb[0].mxu0
    %v1001 = vpop.f32.mrb[0].mxu0
    %v1002 = vadd.f32 %v415, %v1001
    %v1003 = vpop.f32.mrb[0].mxu0
    %1004 = vmatprep.mubr.bf16.mxu0 0
    %1005 = vmatmul.mubr.bf16.gmra.mrb[0].mxu0 %v487
    %v1006 = vpop.f32.mrb[0].mxu0
    %v1007 = vadd.f32 %v415, %v1006
    %v1008 = vpop.f32.mrb[0].mxu0
    %v1009 = vpop.f32.mrb[0].mxu0
    %v1010 = vadd.f32 %v415, %v1009
    %v1011 = vpop.f32.mrb[0].mxu0
    %1012 = vmatprep.mubr.bf16.mxu0 0
    %1013 = vmatmul.mubr.bf16.gmra.mrb[0].mxu0 %v490
    %v1014 = vpop.f32.mrb[0].mxu0
    %v1015 = vadd.f32 %v415, %v1014
    %v1016 = vpop.f32.mrb[0].mxu0
    %v1017 = vpop.f32.mrb[0].mxu0
    %v1018 = vadd.f32 %v415, %v1017
    %v1019 = vpop.f32.mrb[0].mxu0
    %1020 = vmatprep.mubr.bf16.mxu0 0
    %1021 = vmatmul.mubr.bf16.gmra.mrb[0].mxu0 %v493
    %v1022 = vpop.f32.mrb[0].mxu0
    %v1023 = vadd.f32 %v415, %v1022
    %v1024 = vpop.f32.mrb[0].mxu0
    %v1025 = vpop.f32.mrb[0].mxu0
    %v1026 = vadd.f32 %v415, %v1025
    %v1027 = vpop.f32.mrb[0].mxu0
    %1028 = vmatprep.mubr.bf16.mxu0 0
    %1029 = vmatmul.mubr.bf16.gmra.mrb[0].mxu0 %v496
    %v1030 = vpop.f32.mrb[0].mxu0
    %v1031 = vadd.f32 %v415, %v1030
    %v1032 = vpop.f32.mrb[0].mxu0
    %v1033 = vpop.f32.mrb[0].mxu0
    %v1034 = vadd.f32 %v415, %v1033
    %v1035 = vpop.f32.mrb[0].mxu0
    %1036 = vmatprep.mubr.bf16.mxu0 0
    %1037 = vmatmul.mubr.bf16.gmra.mrb[0].mxu0 %v499
    %v1038 = vpop.f32.mrb[0].mxu0
    %v1039 = vadd.f32 %v415, %v1038
    %v1040 = vpop.f32.mrb[0].mxu0
    %v1041 = vpop.f32.mrb[0].mxu0
    %v1042 = vadd.f32 %v415, %v1041
    %v1043 = vpop.f32.mrb[0].mxu0
    %1044 = vmatprep.mubr.bf16.mxu0 0
    %1045 = vmatmul.mubr.bf16.gmra.mrb[0].mxu0 %v502
    %v1046 = vpop.f32.mrb[0].mxu0
    %v1047 = vadd.f32 %v415, %v1046
    %v1048 = vpop.f32.mrb[0].mxu0
    %v1049 = vpop.f32.mrb[0].mxu0
    %v1050 = vadd.f32 %v415, %v1049
    %v1051 = vpop.f32.mrb[0].mxu0
    %1052 = vmatprep.mubr.bf16.mxu0 0
    %1053 = vmatmul.mubr.bf16.gmra.mrb[0].mxu0 %v505
    %v1054 = vpop.f32.mrb[0].mxu0
    %v1055 = vadd.f32 %v415, %v1054
    %v1056 = vpop.f32.mrb[0].mxu0
    %v1057 = vpop.f32.mrb[0].mxu0
    %v1058 = vadd.f32 %v415, %v1057
    %v1059 = vpop.f32.mrb[0].mxu0
    %1060 = vmatprep.mubr.bf16.mxu0 0
    %1061 = vmatmul.mubr.bf16.gmra.mrb[0].mxu0 %v508
    %v1062 = vpop.f32.mrb[0].mxu0
    %v1063 = vadd.f32 %v415, %v1062
    %v1064 = vpop.f32.mrb[0].mxu0
    %v1065 = vpop.f32.mrb[0].mxu0
    %v1066 = vadd.f32 %v415, %v1065
    %v1067 = vpop.f32.mrb[0].mxu0
    %1068 = vmatprep.mubr.bf16.mxu0 0
    %1069 = vmatmul.mubr.bf16.gmra.mrb[0].mxu0 %v511
    %v1070 = vpop.f32.mrb[0].mxu0
    %v1071 = vadd.f32 %v415, %v1070
    %v1072 = vpop.f32.mrb[0].mxu0
    %v1073 = vpop.f32.mrb[0].mxu0
    %v1074 = vadd.f32 %v415, %v1073
    %v1075 = vpop.f32.mrb[0].mxu0
    %1076 = vmatprep.mubr.bf16.mxu0 0
    %1077 = vmatmul.mubr.bf16.gmra.mrb[0].mxu0 %v514
    %v1078 = vpop.f32.mrb[0].mxu0
    %v1079 = vadd.f32 %v415, %v1078
    %v1080 = vpop.f32.mrb[0].mxu0
    %v1081 = vpop.f32.mrb[0].mxu0
    %v1082 = vadd.f32 %v415, %v1081
    %v1083 = vpop.f32.mrb[0].mxu0
    %1084 = vmatprep.mubr.bf16.mxu0 0
    %1085 = vmatmul.mubr.bf16.gmra.mrb[0].mxu0 %v517
    %v1086 = vpop.f32.mrb[0].mxu0
    %v1087 = vadd.f32 %v415, %v1086
    %v1088 = vpop.f32.mrb[0].mxu0
    %v1089 = vpop.f32.mrb[0].mxu0
    %v1090 = vadd.f32 %v415, %v1089
    %v1091 = vpop.f32.mrb[0].mxu0
    %1092 = vmatprep.mubr.bf16.mxu0 0
    %1093 = vmatmul.mubr.bf16.gmra.mrb[0].mxu0 %v520
    %v1094 = vpop.f32.mrb[0].mxu0
    %v1095 = vadd.f32 %v415, %v1094
    %v1096 = vpop.f32.mrb[0].mxu0
    %v1097 = vpop.f32.mrb[0].mxu0
    %v1098 = vadd.f32 %v415, %v1097
    %v1099 = vpop.f32.mrb[0].mxu0
    %1100 = vmatprep.mubr.bf16.mxu0 0
    %1101 = vmatmul.mubr.bf16.gmra.mrb[0].mxu0 %v523
    %v1102 = vpop.f32.mrb[0].mxu0
    %v1103 = vadd.f32 %v415, %v1102
    %v1104 = vpop.f32.mrb[0].mxu0
    %v1105 = vpop.f32.mrb[0].mxu0
    %v1106 = vadd.f32 %v415, %v1105
    %v1107 = vpop.f32.mrb[0].mxu0
    %1108 = vmatprep.mubr.bf16.mxu0 0
    %1109 = vmatmul.mubr.bf16.gmra.mrb[0].mxu0 %v526
    %v1110 = vpop.f32.mrb[0].mxu0
    %v1111 = vadd.f32 %v415, %v1110
    %v1112 = vpop.f32.mrb[0].mxu0
    %v1113 = vpop.f32.mrb[0].mxu0
    %v1114 = vadd.f32 %v415, %v1113
    %v1115 = vpop.f32.mrb[0].mxu0
    %1116 = vmatprep.mubr.bf16.mxu0 0
    %1117 = vmatmul.mubr.bf16.gmra.mrb[0].mxu0 %v529
    %v1118 = vpop.f32.mrb[0].mxu0
    %v1119 = vadd.f32 %v415, %v1118
    %v1120 = vpop.f32.mrb[0].mxu0
    %v1121 = vpop.f32.mrb[0].mxu0
    %v1122 = vadd.f32 %v415, %v1121
    %v1123 = vpop.f32.mrb[0].mxu0
    %1124 = vmatprep.mubr.bf16.mxu0 0
    %1125 = vmatmul.mubr.bf16.gmra.mrb[0].mxu0 %v532
    %v1126 = vpop.f32.mrb[0].mxu0
    %v1127 = vadd.f32 %v415, %v1126
    %v1128 = vpop.f32.mrb[0].mxu0
    %v1129 = vpop.f32.mrb[0].mxu0
    %v1130 = vadd.f32 %v415, %v1129
    %v1131 = vpop.f32.mrb[0].mxu0
    %1132 = vmatprep.mubr.bf16.mxu0 0
    %1133 = vmatmul.mubr.bf16.gmra.mrb[0].mxu0 %v535
    %v1134 = vpop.f32.mrb[0].mxu0
    %v1135 = vadd.f32 %v415, %v1134
    %v1136 = vpop.f32.mrb[0].mxu0
    %v1137 = vpop.f32.mrb[0].mxu0
    %v1138 = vadd.f32 %v415, %v1137
    %v1139 = vpop.f32.mrb[0].mxu0
    %1140 = vmatprep.mubr.bf16.mxu0 0
    %1141 = vmatmul.mubr.bf16.gmra.mrb[0].mxu0 %v538
    %v1142 = vpop.f32.mrb[0].mxu0
    %v1143 = vadd.f32 %v415, %v1142
    %v1144 = vpop.f32.mrb[0].mxu0
    %v1145 = vpop.f32.mrb[0].mxu0
    %v1146 = vadd.f32 %v415, %v1145
    %v1147 = vpop.f32.mrb[0].mxu0
    %1148 = vmatprep.mubr.bf16.mxu0 0
    %1149 = vmatmul.mubr.bf16.gmra.mrb[0].mxu0 %v541
    %v1150 = vpop.f32.mrb[0].mxu0
    %v1151 = vadd.f32 %v415, %v1150
    %v1152 = vpop.f32.mrb[0].mxu0
    %v1153 = vpop.f32.mrb[0].mxu0
    %v1154 = vadd.f32 %v415, %v1153
    %v1155 = vpop.f32.mrb[0].mxu0
    %1156 = vmatprep.mubr.bf16.mxu0 0
    %1157 = vmatmul.mubr.bf16.gmra.mrb[0].mxu0 %v544
    %v1158 = vpop.f32.mrb[0].mxu0
    %v1159 = vadd.f32 %v415, %v1158
    %v1160 = vpop.f32.mrb[0].mxu0
    %v1161 = vpop.f32.mrb[0].mxu0
    %v1162 = vadd.f32 %v415, %v1161
    %v1163 = vpop.f32.mrb[0].mxu0
    %1164 = vmatprep.mubr.bf16.mxu0 0
    %1165 = vmatmul.mubr.bf16.gmra.mrb[0].mxu0 %v547
    %v1166 = vpop.f32.mrb[0].mxu0
    %v1167 = vadd.f32 %v415, %v1166
    %v1168 = vpop.f32.mrb[0].mxu0
    %v1169 = vpop.f32.mrb[0].mxu0
    %v1170 = vadd.f32 %v415, %v1169
    %v1171 = vpop.f32.mrb[0].mxu0
    %1172 = vmatprep.mubr.bf16.mxu0 0
    %1173 = vmatmul.mubr.bf16.gmra.mrb[0].mxu0 %v550
    %v1174 = vpop.f32.mrb[0].mxu0
    %v1175 = vadd.f32 %v415, %v1174
    %v1176 = vpop.f32.mrb[0].mxu0
    %v1177 = vpop.f32.mrb[0].mxu0
    %v1178 = vadd.f32 %v415, %v1177
    %v1179 = vpop.f32.mrb[0].mxu0
    %1180 = vmatprep.mubr.bf16.mxu0 0
    %1181 = vmatmul.mubr.bf16.gmra.mrb[0].mxu0 %v553
    %v1182 = vpop.f32.mrb[0].mxu0
    %v1183 = vadd.f32 %v415, %v1182
    %v1184 = vpop.f32.mrb[0].mxu0
    %v1185 = vpop.f32.mrb[0].mxu0
    %v1186 = vadd.f32 %v415, %v1185
    %v1187 = vpop.f32.mrb[0].mxu0
    %1188 = vmatprep.mubr.bf16.mxu0 0
    %1189 = vmatmul.mubr.bf16.gmra.mrb[0].mxu0 %v556
    %v1190 = vpop.f32.mrb[0].mxu0
    %v1191 = vadd.f32 %v415, %v1190
    %v1192 = vpop.f32.mrb[0].mxu0
    %v1193 = vpop.f32.mrb[0].mxu0
    %v1194 = vadd.f32 %v415, %v1193
    %v1195 = vpop.f32.mrb[0].mxu0
    %1196 = vmatprep.mubr.bf16.mxu0 0
    %1197 = vmatmul.mubr.bf16.gmra.mrb[0].mxu0 %v559
    %v1198 = vpop.f32.mrb[0].mxu0
    %v1199 = vadd.f32 %v415, %v1198
    %v1200 = vpop.f32.mrb[0].mxu0
    %v1201 = vpop.f32.mrb[0].mxu0
    %v1202 = vadd.f32 %v415, %v1201
    %v1203 = vpop.f32.mrb[0].mxu0
    %1204 = vmatprep.mubr.bf16.mxu0 0
    %1205 = vmatmul.mubr.bf16.gmra.mrb[0].mxu0 %v562
    %v1206 = vpop.f32.mrb[0].mxu0
    %v1207 = vadd.f32 %v415, %v1206
    %v1208 = vpop.f32.mrb[0].mxu0
    %v1209 = vpop.f32.mrb[0].mxu0
    %v1210 = vadd.f32 %v415, %v1209
    %v1211 = vpop.f32.mrb[0].mxu0
    %1212 = vmatprep.mubr.bf16.mxu0 0
    %1213 = vmatmul.mubr.bf16.gmra.mrb[0].mxu0 %v565
    %v1214 = vpop.f32.mrb[0].mxu0
    %v1215 = vadd.f32 %v415, %v1214
    %v1216 = vpop.f32.mrb[0].mxu0
    %v1217 = vpop.f32.mrb[0].mxu0
    %v1218 = vadd.f32 %v415, %v1217
    %v1219 = vpop.f32.mrb[0].mxu0
    %1220 = vmatprep.mubr.bf16.mxu0 0
    %1221 = vmatmul.mubr.bf16.gmra.mrb[0].mxu0 %v568
    %v1222 = vpop.f32.mrb[0].mxu0
    %v1223 = vadd.f32 %v415, %v1222
    %v1224 = vpop.f32.mrb[0].mxu0
    %v1225 = vpop.f32.mrb[0].mxu0
    %v1226 = vadd.f32 %v415, %v1225
    %v1227 = vpop.f32.mrb[0].mxu0
    %1228 = vmatprep.mubr.bf16.mxu0 0
    %1229 = vmatmul.mubr.bf16.gmra.mrb[0].mxu0 %v571
    %v1230 = vpop.f32.mrb[0].mxu0
    %v1231 = vadd.f32 %v415, %v1230
    %v1232 = vpop.f32.mrb[0].mxu0
    %v1233 = vpop.f32.mrb[0].mxu0
    %v1234 = vadd.f32 %v415, %v1233
    %v1235 = vpop.f32.mrb[0].mxu0
    %1236 = vmatprep.mubr.bf16.mxu0 0
    %1237 = vmatmul.mubr.bf16.gmra.mrb[0].mxu0 %v574
    %v1238 = vpop.f32.mrb[0].mxu0
    %v1239 = vadd.f32 %v415, %v1238
    %v1240 = vpop.f32.mrb[0].mxu0
    %v1241 = vpop.f32.mrb[0].mxu0
    %v1242 = vadd.f32 %v415, %v1241
    %v1243 = vpop.f32.mrb[0].mxu0
    %1244 = vmatprep.mubr.bf16.mxu0 0
    %1245 = vmatmul.mubr.bf16.gmra.mrb[0].mxu0 %v577
    %v1246 = vpop.f32.mrb[0].mxu0
    %v1247 = vadd.f32 %v415, %v1246
    %v1248 = vpop.f32.mrb[0].mxu0
    %v1249 = vpop.f32.mrb[0].mxu0
    %v1250 = vadd.f32 %v415, %v1249
    %v1251 = vpop.f32.mrb[0].mxu0
    %1252 = vmatprep.mubr.bf16.mxu0 0
    %1253 = vmatmul.mubr.bf16.gmra.mrb[0].mxu0 %v580
    %v1254 = vpop.f32.mrb[0].mxu0
    %v1255 = vadd.f32 %v415, %v1254
    %v1256 = vpop.f32.mrb[0].mxu0
    %v1257 = vpop.f32.mrb[0].mxu0
    %v1258 = vadd.f32 %v415, %v1257
    %v1259 = vpop.f32.mrb[0].mxu0
    %1260 = vmatprep.mubr.bf16.mxu0 0
    %1261 = vmatmul.mubr.bf16.gmra.mrb[0].mxu0 %v583
    %v1262 = vpop.f32.mrb[0].mxu0
    %v1263 = vadd.f32 %v415, %v1262
    %v1264 = vpop.f32.mrb[0].mxu0
    %v1265 = vpop.f32.mrb[0].mxu0
    %v1266 = vadd.f32 %v415, %v1265
    %v1267 = vpop.f32.mrb[0].mxu0
    %1268 = vmatprep.mubr.bf16.mxu0 0
    %1269 = vmatmul.mubr.bf16.gmra.mrb[0].mxu0 %v586
    %v1270 = vpop.f32.mrb[0].mxu0
    %v1271 = vadd.f32 %v415, %v1270
    %v1272 = vpop.f32.mrb[0].mxu0
    %v1273 = vpop.f32.mrb[0].mxu0
    %v1274 = vadd.f32 %v415, %v1273
    %v1275 = vpop.f32.mrb[0].mxu0
    %1276 = vmatprep.mubr.bf16.mxu0 0
    %1277 = vmatmul.mubr.bf16.gmra.mrb[0].mxu0 %v589
    %v1278 = vpop.f32.mrb[0].mxu0
    %v1279 = vadd.f32 %v415, %v1278
    %v1280 = vpop.f32.mrb[0].mxu0
    %v1281 = vpop.f32.mrb[0].mxu0
    %v1282 = vadd.f32 %v415, %v1281
    %v1283 = vpop.f32.mrb[0].mxu0
    %1284 = vmatprep.mubr.bf16.mxu0 0
    %1285 = vmatmul.mubr.bf16.gmra.mrb[0].mxu0 %v592
    %v1286 = vpop.f32.mrb[0].mxu0
    %v1287 = vadd.f32 %v415, %v1286
    %v1288 = vpop.f32.mrb[0].mxu0
    %v1289 = vpop.f32.mrb[0].mxu0
    %v1290 = vadd.f32 %v415, %v1289
    %v1291 = vpop.f32.mrb[0].mxu0
    %1292 = vmatprep.mubr.bf16.mxu0 0
    %1293 = vmatmul.mubr.bf16.gmra.mrb[0].mxu0 %v595
    %v1294 = vpop.f32.mrb[0].mxu0
    %v1295 = vadd.f32 %v415, %v1294
    %v1296 = vpop.f32.mrb[0].mxu0
    %v1297 = vpop.f32.mrb[0].mxu0
    %v1298 = vadd.f32 %v415, %v1297
    %v1299 = vpop.f32.mrb[0].mxu0
    %1300 = vmatprep.mubr.bf16.mxu0 0
    %1301 = vmatmul.mubr.bf16.gmra.mrb[0].mxu0 %v598
    %v1302 = vpop.f32.mrb[0].mxu0
    %v1303 = vadd.f32 %v415, %v1302
    %v1304 = vpop.f32.mrb[0].mxu0
    %v1305 = vpop.f32.mrb[0].mxu0
    %v1306 = vadd.f32 %v415, %v1305
    %v1307 = vpop.f32.mrb[0].mxu0
    %1308 = vmatprep.mubr.bf16.mxu0 0
    %1309 = vmatmul.mubr.bf16.gmra.mrb[0].mxu0 %v601
    %v1310 = vpop.f32.mrb[0].mxu0
    %v1311 = vadd.f32 %v415, %v1310
    %v1312 = vpop.f32.mrb[0].mxu0
    %v1313 = vpop.f32.mrb[0].mxu0
    %v1314 = vadd.f32 %v415, %v1313
    %v1315 = vpop.f32.mrb[0].mxu0
    %1316 = vmatprep.mubr.bf16.mxu0 0
    %1317 = vmatmul.mubr.bf16.gmra.mrb[0].mxu0 %v604
    %v1318 = vpop.f32.mrb[0].mxu0
    %v1319 = vadd.f32 %v415, %v1318
    %v1320 = vpop.f32.mrb[0].mxu0
    %v1321 = vpop.f32.mrb[0].mxu0
    %v1322 = vadd.f32 %v415, %v1321
    %v1323 = vpop.f32.mrb[0].mxu0
    %1324 = vmatprep.mubr.bf16.mxu0 0
    %1325 = vmatmul.mubr.bf16.gmra.mrb[0].mxu0 %v607
    %v1326 = vpop.f32.mrb[0].mxu0
    %v1327 = vadd.f32 %v415, %v1326
    %v1328 = vpop.f32.mrb[0].mxu0
    %v1329 = vpop.f32.mrb[0].mxu0
    %v1330 = vadd.f32 %v415, %v1329
    %v1331 = vpop.f32.mrb[0].mxu0
    %1332 = vmatprep.mubr.bf16.mxu0 0
    %1333 = vmatmul.mubr.bf16.gmra.mrb[0].mxu0 %v610
    %v1334 = vpop.f32.mrb[0].mxu0
    %v1335 = vadd.f32 %v415, %v1334
    %v1336 = vpop.f32.mrb[0].mxu0
    %v1337 = vpop.f32.mrb[0].mxu0
    %v1338 = vadd.f32 %v415, %v1337
    %v1339 = vpop.f32.mrb[0].mxu0
    %1340 = vmatprep.mubr.bf16.mxu0 0
    %1341 = vmatmul.mubr.bf16.gmra.mrb[0].mxu0 %v613
    %v1342 = vpop.f32.mrb[0].mxu0
    %v1343 = vadd.f32 %v415, %v1342
    %v1344 = vpop.f32.mrb[0].mxu0
    %v1345 = vpop.f32.mrb[0].mxu0
    %v1346 = vadd.f32 %v415, %v1345
    %v1347 = vpop.f32.mrb[0].mxu0
    %1348 = vmatprep.mubr.bf16.mxu0 0
    %1349 = vmatmul.mubr.bf16.gmra.mrb[0].mxu0 %v616
    %v1350 = vpop.f32.mrb[0].mxu0
    %v1351 = vadd.f32 %v415, %v1350
    %v1352 = vpop.f32.mrb[0].mxu0
    %v1353 = vpop.f32.mrb[0].mxu0
    %v1354 = vadd.f32 %v415, %v1353
    %v1355 = vpop.f32.mrb[0].mxu0
    %1356 = vmatprep.mubr.bf16.mxu0 0
    %1357 = vmatmul.mubr.bf16.gmra.mrb[0].mxu0 %v619
    %v1358 = vpop.f32.mrb[0].mxu0
    %v1359 = vadd.f32 %v415, %v1358
    %v1360 = vpop.f32.mrb[0].mxu0
    %v1361 = vpop.f32.mrb[0].mxu0
    %v1362 = vadd.f32 %v415, %v1361
    %v1363 = vpop.f32.mrb[0].mxu0
    %1364 = vmatprep.mubr.bf16.mxu0 0
    %1365 = vmatmul.mubr.bf16.gmra.mrb[0].mxu0 %v622
    %v1366 = vpop.f32.mrb[0].mxu0
    %v1367 = vadd.f32 %v415, %v1366
    %v1368 = vpop.f32.mrb[0].mxu0
    %v1369 = vpop.f32.mrb[0].mxu0
    %v1370 = vadd.f32 %v415, %v1369
    %v1371 = vpop.f32.mrb[0].mxu0
    %1372 = vmatprep.mubr.bf16.mxu0 0
    %1373 = vmatmul.mubr.bf16.gmra.mrb[0].mxu0 %v625
    %v1374 = vpop.f32.mrb[0].mxu0
    %v1375 = vadd.f32 %v415, %v1374
    %v1376 = vpop.f32.mrb[0].mxu0
    %v1377 = vpop.f32.mrb[0].mxu0
    %v1378 = vadd.f32 %v415, %v1377
    %v1379 = vpop.f32.mrb[0].mxu0
    %1380 = vmatprep.mubr.bf16.mxu0 0
    %1381 = vmatmul.mubr.bf16.gmra.mrb[0].mxu0 %v628
    %v1382 = vpop.f32.mrb[0].mxu0
    %v1383 = vadd.f32 %v415, %v1382
    %v1384 = vpop.f32.mrb[0].mxu0
    %v1385 = vpop.f32.mrb[0].mxu0
    %v1386 = vadd.f32 %v415, %v1385
    %v1387 = vpop.f32.mrb[0].mxu0
    %1388 = vmatprep.mubr.bf16.mxu0 0
    %1389 = vmatmul.mubr.bf16.gmra.mrb[0].mxu0 %v631
    %v1390 = vpop.f32.mrb[0].mxu0
    %v1391 = vadd.f32 %v415, %v1390
    %v1392 = vpop.f32.mrb[0].mxu0
    %v1393 = vpop.f32.mrb[0].mxu0
    %v1394 = vadd.f32 %v415, %v1393
    %v1395 = vpop.f32.mrb[0].mxu0
    %1396 = vmatprep.mubr.bf16.mxu0 0
    %1397 = vmatmul.mubr.bf16.gmra.mrb[0].mxu0 %v634
    %v1398 = vpop.f32.mrb[0].mxu0
    %v1399 = vadd.f32 %v415, %v1398
    %v1400 = vpop.f32.mrb[0].mxu0
    %v1401 = vpop.f32.mrb[0].mxu0
    %v1402 = vadd.f32 %v415, %v1401
    %v1403 = vpop.f32.mrb[0].mxu0
    %1404 = vmatprep.mubr.bf16.mxu0 0
    %1405 = vmatmul.mubr.bf16.gmra.mrb[0].mxu0 %v637
    %v1406 = vpop.f32.mrb[0].mxu0
    %v1407 = vadd.f32 %v415, %v1406
    %v1408 = vpop.f32.mrb[0].mxu0
    %v1409 = vpop.f32.mrb[0].mxu0
    %v1410 = vadd.f32 %v415, %v1409
    %v1411 = vpop.f32.mrb[0].mxu0
    %1412 = vmatprep.mubr.bf16.mxu0 0
    %1413 = vmatmul.mubr.bf16.gmra.mrb[0].mxu0 %v640
    %v1414 = vpop.f32.mrb[0].mxu0
    %v1415 = vadd.f32 %v415, %v1414
    %v1416 = vpop.f32.mrb[0].mxu0
    %v1417 = vpop.f32.mrb[0].mxu0
    %v1418 = vadd.f32 %v415, %v1417
    %v1419 = vpop.f32.mrb[0].mxu0
    %1420 = vmatprep.mubr.bf16.mxu0 0
    %1421 = vmatmul.mubr.bf16.gmra.mrb[0].mxu0 %v643
    %v1422 = vpop.f32.mrb[0].mxu0
    %v1423 = vadd.f32 %v415, %v1422
    %v1424 = vpop.f32.mrb[0].mxu0
    %v1425 = vpop.f32.mrb[0].mxu0
    %v1426 = vadd.f32 %v415, %v1425
    %v1427 = vpop.f32.mrb[0].mxu0
    %1428 = vmatprep.mubr.bf16.mxu0 0
    %1429 = vmatmul.mubr.bf16.gmra.mrb[0].mxu0 %v646
    %v1430 = vpop.f32.mrb[0].mxu0
    %v1431 = vadd.f32 %v415, %v1430
    %v1432 = vpop.f32.mrb[0].mxu0
    %v1433 = vpop.f32.mrb[0].mxu0
    %v1434 = vadd.f32 %v415, %v1433
    %v1435 = vpop.f32.mrb[0].mxu0
    %1436 = vmatprep.mubr.bf16.mxu0 0
    %1437 = vmatmul.mubr.bf16.gmra.mrb[0].mxu0 %v649
    %v1438 = vpop.f32.mrb[0].mxu0
    %v1439 = vadd.f32 %v415, %v1438
    %v1440 = vpop.f32.mrb[0].mxu0
    %v1441 = vpop.f32.mrb[0].mxu0
    %v1442 = vadd.f32 %v415, %v1441
    %v1443 = vpop.f32.mrb[0].mxu0
    %1444 = vmatprep.mubr.bf16.mxu0 0
    %1445 = vmatmul.mubr.bf16.gmra.mrb[0].mxu0 %v652
    %v1446 = vpop.f32.mrb[0].mxu0
    %v1447 = vadd.f32 %v415, %v1446
    %v1448 = vpop.f32.mrb[0].mxu0
    %v1449 = vpop.f32.mrb[0].mxu0
    %v1450 = vadd.f32 %v415, %v1449
    %v1451 = vpop.f32.mrb[0].mxu0
    %1452 = vmatprep.mubr.bf16.mxu0 0
    %1453 = vmatmul.mubr.bf16.gmra.mrb[0].mxu0 %v655
    %v1454 = vpop.f32.mrb[0].mxu0
    %v1455 = vadd.f32 %v415, %v1454
    %v1456 = vpop.f32.mrb[0].mxu0
    %v1457 = vpop.f32.mrb[0].mxu0
    %v1458 = vadd.f32 %v415, %v1457
    %v1459 = vpop.f32.mrb[0].mxu0
    %1460 = vmatprep.mubr.bf16.mxu0 0
    %1461 = vmatmul.mubr.bf16.gmra.mrb[0].mxu0 %v658
    %v1462 = vpop.f32.mrb[0].mxu0
    %v1463 = vadd.f32 %v415, %v1462
    %v1464 = vpop.f32.mrb[0].mxu0
    %v1465 = vpop.f32.mrb[0].mxu0
    %v1466 = vadd.f32 %v415, %v1465
    %v1467 = vpop.f32.mrb[0].mxu0
    %1468 = vmatprep.mubr.bf16.mxu0 0
    %1469 = vmatmul.mubr.bf16.gmra.mrb[0].mxu0 %v661
    %v1470 = vpop.f32.mrb[0].mxu0
    %v1471 = vadd.f32 %v415, %v1470
    %v1472 = vpop.f32.mrb[0].mxu0
    %v1473 = vpop.f32.mrb[0].mxu0
    %v1474 = vadd.f32 %v415, %v1473
    %v1475 = vpop.f32.mrb[0].mxu0
    %1476 = vmatprep.mubr.bf16.mxu0 0
    %1477 = vmatmul.mubr.bf16.gmra.mrb[0].mxu0 %v664
    %v1478 = vpop.f32.mrb[0].mxu0
    %v1479 = vadd.f32 %v415, %v1478
    %v1480 = vpop.f32.mrb[0].mxu0
    %v1481 = vpop.f32.mrb[0].mxu0
    %v1482 = vadd.f32 %v415, %v1481
    %v1483 = vpop.f32.mrb[0].mxu0
    %1484 = vmatprep.mubr.bf16.mxu0 0
    %1485 = vmatmul.mubr.bf16.gmra.mrb[0].mxu0 %v667
    %v1486 = vpop.f32.mrb[0].mxu0
    %v1487 = vadd.f32 %v415, %v1486
    %v1488 = vpop.f32.mrb[0].mxu0
    %v1489 = vpop.f32.mrb[0].mxu0
    %v1490 = vadd.f32 %v415, %v1489
    %v1491 = vpop.f32.mrb[0].mxu0
    %1492 = vmatprep.mubr.bf16.mxu0 0
    %1493 = vmatmul.mubr.bf16.gmra.mrb[0].mxu0 %v670
    %v1494 = vpop.f32.mrb[0].mxu0
    %v1495 = vadd.f32 %v415, %v1494
    %v1496 = vpop.f32.mrb[0].mxu0
    %v1497 = vpop.f32.mrb[0].mxu0
    %v1498 = vadd.f32 %v415, %v1497
    %v1499 = vpop.f32.mrb[0].mxu0
    %1500 = vmatprep.mubr.bf16.mxu0 0
    %1501 = vmatmul.mubr.bf16.gmra.mrb[0].mxu0 %v673
    %v1502 = vpop.f32.mrb[0].mxu0
    %v1503 = vadd.f32 %v415, %v1502
    %v1504 = vpop.f32.mrb[0].mxu0
    %v1505 = vpop.f32.mrb[0].mxu0
    %v1506 = vadd.f32 %v415, %v1505
    %v1507 = vpop.f32.mrb[0].mxu0
    %1508 = vmatprep.mubr.bf16.mxu0 0
    %1509 = vmatmul.mubr.bf16.gmra.mrb[0].mxu0 %v676
    %v1510 = vpop.f32.mrb[0].mxu0
    %v1511 = vadd.f32 %v415, %v1510
    %v1512 = vpop.f32.mrb[0].mxu0
    %v1513 = vpop.f32.mrb[0].mxu0
    %v1514 = vadd.f32 %v415, %v1513
    %v1515 = vpop.f32.mrb[0].mxu0
    %1516 = vmatprep.mubr.bf16.mxu0 0
    %1517 = vmatmul.mubr.bf16.gmra.mrb[0].mxu0 %v679
    %v1518 = vpop.f32.mrb[0].mxu0
    %v1519 = vadd.f32 %v415, %v1518
    %v1520 = vpop.f32.mrb[0].mxu0
    %v1521 = vpop.f32.mrb[0].mxu0
    %v1522 = vadd.f32 %v415, %v1521
    %v1523 = vpop.f32.mrb[0].mxu0
    %1524 = vmatprep.mubr.bf16.mxu0 0
    %1525 = vmatmul.mubr.bf16.gmra.mrb[0].mxu0 %v682
    %v1526 = vpop.f32.mrb[0].mxu0
    %v1527 = vadd.f32 %v415, %v1526
    %v1528 = vpop.f32.mrb[0].mxu0
    %v1529 = vpop.f32.mrb[0].mxu0
    %v1530 = vadd.f32 %v415, %v1529
    %v1531 = vpop.f32.mrb[0].mxu0
    %1532 = vmatprep.mubr.bf16.mxu0 0
    %1533 = vmatmul.mubr.bf16.gmra.mrb[0].mxu0 %v685
    %v1534 = vpop.f32.mrb[0].mxu0
    %v1535 = vadd.f32 %v415, %v1534
    %v1536 = vpop.f32.mrb[0].mxu0
    %v1537 = vpop.f32.mrb[0].mxu0
    %v1538 = vadd.f32 %v415, %v1537
    %v1539 = vpop.f32.mrb[0].mxu0
    %1540 = vmatprep.mubr.bf16.mxu0 0
    %1541 = vmatmul.mubr.bf16.gmra.mrb[0].mxu0 %v688
    %v1542 = vpop.f32.mrb[0].mxu0
    %v1543 = vadd.f32 %v415, %v1542
    %v1544 = vpop.f32.mrb[0].mxu0
    %v1545 = vpop.f32.mrb[0].mxu0
    %v1546 = vadd.f32 %v415, %v1545
    %v1547 = vpop.f32.mrb[0].mxu0
    %1548 = vmatprep.mubr.bf16.mxu0 0
    %1549 = vmatmul.mubr.bf16.gmra.mrb[0].mxu0 %v691
    %v1550 = vpop.f32.mrb[0].mxu0
    %v1551 = vadd.f32 %v415, %v1550
    %v1552 = vpop.f32.mrb[0].mxu0
    %v1553 = vpop.f32.mrb[0].mxu0
    %v1554 = vadd.f32 %v415, %v1553
    %v1555 = vpop.f32.mrb[0].mxu0
    %1556 = vmatprep.mubr.bf16.mxu0 0
    %1557 = vmatmul.mubr.bf16.gmra.mrb[0].mxu0 %v694
    %v1558 = vpop.f32.mrb[0].mxu0
    %v1559 = vadd.f32 %v415, %v1558
    %v1560 = vpop.f32.mrb[0].mxu0
    %v1561 = vpop.f32.mrb[0].mxu0
    %v1562 = vadd.f32 %v415, %v1561
    %v1563 = vpop.f32.mrb[0].mxu0
    %1564 = vmatprep.mubr.bf16.mxu0 0
    %1565 = vmatmul.mubr.bf16.gmra.mrb[0].mxu0 %v697
    %v1566 = vpop.f32.mrb[0].mxu0
    %v1567 = vadd.f32 %v415, %v1566
    %v1568 = vpop.f32.mrb[0].mxu0
    %v1569 = vpop.f32.mrb[0].mxu0
    %v1570 = vadd.f32 %v415, %v1569
    %v1571 = vpop.f32.mrb[0].mxu0
    %1572 = vmatprep.mubr.bf16.mxu0 0
    %1573 = vmatmul.mubr.bf16.gmra.mrb[0].mxu0 %v700
    %v1574 = vpop.f32.mrb[0].mxu0
    %v1575 = vadd.f32 %v415, %v1574
    %v1576 = vpop.f32.mrb[0].mxu0
    %v1577 = vpop.f32.mrb[0].mxu0
    %v1578 = vadd.f32 %v415, %v1577
    %v1579 = vpop.f32.mrb[0].mxu0
    %1580 = vmatprep.mubr.bf16.mxu0 0
    %1581 = vmatmul.mubr.bf16.gmra.mrb[0].mxu0 %v703
    %v1582 = vpop.f32.mrb[0].mxu0
    %v1583 = vadd.f32 %v415, %v1582
    %v1584 = vpop.f32.mrb[0].mxu0
    %v1585 = vpop.f32.mrb[0].mxu0
    %v1586 = vadd.f32 %v415, %v1585
    %v1587 = vpop.f32.mrb[0].mxu0
    %1588 = vmatprep.mubr.bf16.mxu0 0
    %1589 = vmatmul.mubr.bf16.gmra.mrb[0].mxu0 %v706
    %v1590 = vpop.f32.mrb[0].mxu0
    %v1591 = vadd.f32 %v415, %v1590
    %v1592 = vpop.f32.mrb[0].mxu0
    %v1593 = vpop.f32.mrb[0].mxu0
    %v1594 = vadd.f32 %v415, %v1593
    %v1595 = vpop.f32.mrb[0].mxu0
    %1596 = vmatprep.mubr.bf16.mxu0 0
    %1597 = vmatmul.mubr.bf16.gmra.mrb[0].mxu0 %v709
    %v1598 = vpop.f32.mrb[0].mxu0
    %v1599 = vadd.f32 %v415, %v1598
    %v1600 = vpop.f32.mrb[0].mxu0
    %v1601 = vpop.f32.mrb[0].mxu0
    %v1602 = vadd.f32 %v415, %v1601
    %v1603 = vpop.f32.mrb[0].mxu0
    %1604 = vmatprep.mubr.bf16.mxu0 0
    %1605 = vmatmul.mubr.bf16.gmra.mrb[0].mxu0 %v712
    %v1606 = vpop.f32.mrb[0].mxu0
    %v1607 = vadd.f32 %v415, %v1606
    %v1608 = vpop.f32.mrb[0].mxu0
    %v1609 = vpop.f32.mrb[0].mxu0
    %v1610 = vadd.f32 %v415, %v1609
    %v1611 = vpop.f32.mrb[0].mxu0
    %1612 = vmatprep.mubr.bf16.mxu0 0
    %1613 = vmatmul.mubr.bf16.gmra.mrb[0].mxu0 %v715
    %v1614 = vpop.f32.mrb[0].mxu0
    %v1615 = vadd.f32 %v415, %v1614
    %v1616 = vpop.f32.mrb[0].mxu0
    %v1617 = vpop.f32.mrb[0].mxu0
    %v1618 = vadd.f32 %v415, %v1617
    %v1619 = vpop.f32.mrb[0].mxu0
    %1620 = vmatprep.mubr.bf16.mxu0 0
    %1621 = vmatmul.mubr.bf16.gmra.mrb[0].mxu0 %v718
    %v1622 = vpop.f32.mrb[0].mxu0
    %v1623 = vadd.f32 %v415, %v1622
    %v1624 = vpop.f32.mrb[0].mxu0
    %v1625 = vpop.f32.mrb[0].mxu0
    %v1626 = vadd.f32 %v415, %v1625
    %v1627 = vpop.f32.mrb[0].mxu0
    %1628 = vmatprep.mubr.bf16.mxu0 0
    %1629 = vmatmul.mubr.bf16.gmra.mrb[0].mxu0 %v721
    %v1630 = vpop.f32.mrb[0].mxu0
    %v1631 = vadd.f32 %v415, %v1630
    %v1632 = vpop.f32.mrb[0].mxu0
    %v1633 = vpop.f32.mrb[0].mxu0
    %v1634 = vadd.f32 %v415, %v1633
    %v1635 = vpop.f32.mrb[0].mxu0
    %1636 = vmatprep.mubr.bf16.mxu0 0
    %1637 = vmatmul.mubr.bf16.gmra.mrb[0].mxu0 %v724
    %v1638 = vpop.f32.mrb[0].mxu0
    %v1639 = vadd.f32 %v415, %v1638
    %v1640 = vpop.f32.mrb[0].mxu0
    %v1641 = vpop.f32.mrb[0].mxu0
    %v1642 = vadd.f32 %v415, %v1641
    %v1643 = vpop.f32.mrb[0].mxu0
    %1644 = vmatprep.mubr.bf16.mxu0 0
    %1645 = vmatmul.mubr.bf16.gmra.mrb[0].mxu0 %v727
    %v1646 = vpop.f32.mrb[0].mxu0
    %v1647 = vadd.f32 %v415, %v1646
    %v1648 = vpop.f32.mrb[0].mxu0
    %v1649 = vpop.f32.mrb[0].mxu0
    %v1650 = vadd.f32 %v415, %v1649
    %v1651 = vpop.f32.mrb[0].mxu0
    %1652 = vmatprep.mubr.bf16.mxu0 0
    %1653 = vmatmul.mubr.bf16.gmra.mrb[0].mxu0 %v730
    %v1654 = vpop.f32.mrb[0].mxu0
    %v1655 = vadd.f32 %v415, %v1654
    %v1656 = vpop.f32.mrb[0].mxu0
    %v1657 = vpop.f32.mrb[0].mxu0
    %v1658 = vadd.f32 %v415, %v1657
    %v1659 = vpop.f32.mrb[0].mxu0
    %1660 = vmatprep.mubr.bf16.mxu0 0
    %1661 = vmatmul.mubr.bf16.gmra.mrb[0].mxu0 %v733
    %v1662 = vpop.f32.mrb[0].mxu0
    %v1663 = vadd.f32 %v415, %v1662
    %v1664 = vpop.f32.mrb[0].mxu0
    %v1665 = vpop.f32.mrb[0].mxu0
    %v1666 = vadd.f32 %v415, %v1665
    %v1667 = vpop.f32.mrb[0].mxu0
    %1668 = vmatprep.mubr.bf16.mxu0 0
    %1669 = vmatmul.mubr.bf16.gmra.mrb[0].mxu0 %v736
    %v1670 = vpop.f32.mrb[0].mxu0
    %v1671 = vadd.f32 %v415, %v1670
    %v1672 = vpop.f32.mrb[0].mxu0
    %v1673 = vpop.f32.mrb[0].mxu0
    %v1674 = vadd.f32 %v415, %v1673
    %v1675 = vpop.f32.mrb[0].mxu0
    %1676 = vmatprep.mubr.bf16.mxu0 0
    %1677 = vmatmul.mubr.bf16.gmra.mrb[0].mxu0 %v739
    %v1678 = vpop.f32.mrb[0].mxu0
    %v1679 = vadd.f32 %v415, %v1678
    %v1680 = vpop.f32.mrb[0].mxu0
    %v1681 = vpop.f32.mrb[0].mxu0
    %v1682 = vadd.f32 %v415, %v1681
    %v1683 = vpop.f32.mrb[0].mxu0
    %1684 = vmatprep.mubr.bf16.mxu0 0
    %1685 = vmatmul.mubr.bf16.gmra.mrb[0].mxu0 %v742
    %v1686 = vpop.f32.mrb[0].mxu0
    %v1687 = vadd.f32 %v415, %v1686
    %v1688 = vpop.f32.mrb[0].mxu0
    %v1689 = vpop.f32.mrb[0].mxu0
    %v1690 = vadd.f32 %v415, %v1689
    %v1691 = vpop.f32.mrb[0].mxu0
    %1692 = vmatprep.mubr.bf16.mxu0 0
    %1693 = vmatmul.mubr.bf16.gmra.mrb[0].mxu0 %v745
    %v1694 = vpop.f32.mrb[0].mxu0
    %v1695 = vadd.f32 %v415, %v1694
    %v1696 = vpop.f32.mrb[0].mxu0
    %v1697 = vpop.f32.mrb[0].mxu0
    %v1698 = vadd.f32 %v415, %v1697
    %v1699 = vpop.f32.mrb[0].mxu0
    %1700 = vmatprep.mubr.bf16.mxu0 0
    %1701 = vmatmul.mubr.bf16.gmra.mrb[0].mxu0 %v748
    %v1702 = vpop.f32.mrb[0].mxu0
    %v1703 = vadd.f32 %v415, %v1702
    %v1704 = vpop.f32.mrb[0].mxu0
    %v1705 = vpop.f32.mrb[0].mxu0
    %v1706 = vadd.f32 %v415, %v1705
    %v1707 = vpop.f32.mrb[0].mxu0
    %1708 = vmatprep.mubr.bf16.mxu0 0
    %1709 = vmatmul.mubr.bf16.gmra.mrb[0].mxu0 %v751
    %v1710 = vpop.f32.mrb[0].mxu0
    %v1711 = vadd.f32 %v415, %v1710
    %v1712 = vpop.f32.mrb[0].mxu0
    %v1713 = vpop.f32.mrb[0].mxu0
    %v1714 = vadd.f32 %v415, %v1713
    %v1715 = vpop.f32.mrb[0].mxu0
    %1716 = vmatprep.mubr.bf16.mxu0 0
    %1717 = vmatmul.mubr.bf16.gmra.mrb[0].mxu0 %v754
    %v1718 = vpop.f32.mrb[0].mxu0
    %v1719 = vadd.f32 %v415, %v1718
    %v1720 = vpop.f32.mrb[0].mxu0
    %v1721 = vpop.f32.mrb[0].mxu0
    %v1722 = vadd.f32 %v415, %v1721
    %v1723 = vpop.f32.mrb[0].mxu0
    %1724 = vmatprep.mubr.bf16.mxu0 0
    %1725 = vmatmul.mubr.bf16.gmra.mrb[0].mxu0 %v757
    %v1726 = vpop.f32.mrb[0].mxu0
    %v1727 = vadd.f32 %v415, %v1726
    %v1728 = vpop.f32.mrb[0].mxu0
    %v1729 = vpop.f32.mrb[0].mxu0
    %v1730 = vadd.f32 %v415, %v1729
    %v1731 = vpop.f32.mrb[0].mxu0
    %1732 = vmatprep.mubr.bf16.mxu0 0
    %1733 = vmatmul.mubr.bf16.gmra.mrb[0].mxu0 %v760
    %v1734 = vpop.f32.mrb[0].mxu0
    %v1735 = vadd.f32 %v415, %v1734
    %v1736 = vpop.f32.mrb[0].mxu0
    %v1737 = vpop.f32.mrb[0].mxu0
    %v1738 = vadd.f32 %v415, %v1737
    %v1739 = vpop.f32.mrb[0].mxu0
    %1740 = vmatprep.mubr.bf16.mxu0 0
    %1741 = vmatmul.mubr.bf16.gmra.mrb[0].mxu0 %v763
    %v1742 = vpop.f32.mrb[0].mxu0
    %v1743 = vadd.f32 %v415, %v1742
    %v1744 = vpop.f32.mrb[0].mxu0
    %v1745 = vpop.f32.mrb[0].mxu0
    %v1746 = vadd.f32 %v415, %v1745
    %v1747 = vpop.f32.mrb[0].mxu0
    %1748 = vmatprep.mubr.bf16.mxu0 0
    %1749 = vmatmul.mubr.bf16.gmra.mrb[0].mxu0 %v766
    %v1750 = vpop.f32.mrb[0].mxu0
    %v1751 = vadd.f32 %v415, %v1750
    %v1752 = vpop.f32.mrb[0].mxu0
    %v1753 = vpop.f32.mrb[0].mxu0
    %v1754 = vadd.f32 %v415, %v1753
    %v1755 = vpop.f32.mrb[0].mxu0
    %1756 = vmatprep.mubr.bf16.mxu0 0
    %1757 = vmatmul.mubr.bf16.gmra.mrb[0].mxu0 %v769
    %v1758 = vpop.f32.mrb[0].mxu0
    %v1759 = vadd.f32 %v415, %v1758
    %v1760 = vpop.f32.mrb[0].mxu0
    %v1761 = vpop.f32.mrb[0].mxu0
    %v1762 = vadd.f32 %v415, %v1761
    %v1763 = vpop.f32.mrb[0].mxu0
    %1764 = vmatprep.mubr.bf16.mxu0 0
    %1765 = vmatmul.mubr.bf16.gmra.mrb[0].mxu0 %v772
    %v1766 = vpop.f32.mrb[0].mxu0
    %v1767 = vadd.f32 %v415, %v1766
    %v1768 = vpop.f32.mrb[0].mxu0
    %v1769 = vpop.f32.mrb[0].mxu0
    %v1770 = vadd.f32 %v415, %v1769
    %v1771 = vpop.f32.mrb[0].mxu0
    %1772 = vmatprep.mubr.bf16.mxu0 0
    %1773 = vmatmul.mubr.bf16.gmra.mrb[0].mxu0 %v775
    %v1774 = vpop.f32.mrb[0].mxu0
    %v1775 = vadd.f32 %v415, %v1774
    %v1776 = vpop.f32.mrb[0].mxu0
    %v1777 = vpop.f32.mrb[0].mxu0
    %v1778 = vadd.f32 %v415, %v1777
    %v1779 = vpop.f32.mrb[0].mxu0
    %1780 = vmatprep.mubr.bf16.mxu0 0
    %1781 = vmatmul.mubr.bf16.gmra.mrb[0].mxu0 %v778
    %v1782 = vpop.f32.mrb[0].mxu0
    %v1783 = vadd.f32 %v415, %v1782
    %v1784 = vpop.f32.mrb[0].mxu0
    %v1785 = vpop.f32.mrb[0].mxu0
    %v1786 = vadd.f32 %v415, %v1785
    %v1787 = vpop.f32.mrb[0].mxu0
    %1788 = vmatprep.mubr.bf16.mxu0 0
    %1789 = vmatmul.mubr.bf16.gmra.mrb[0].mxu0 %v781
    %v1790 = vpop.f32.mrb[0].mxu0
    %v1791 = vadd.f32 %v415, %v1790
    %v1792 = vpop.f32.mrb[0].mxu0
    %v1793 = vpop.f32.mrb[0].mxu0
    %v1794 = vadd.f32 %v415, %v1793
    %v1795 = vpop.f32.mrb[0].mxu0
    %1796 = vmatprep.mubr.bf16.mxu0 0
    %1797 = vmatmul.mubr.bf16.gmra.mrb[0].mxu0 %v784
    %v1798 = vpop.f32.mrb[0].mxu0
    %v1799 = vadd.f32 %v415, %v1798
    %v1800 = vpop.f32.mrb[0].mxu0
    %v1801 = vpop.f32.mrb[0].mxu0
    %v1802 = vadd.f32 %v415, %v1801
    %v1803 = vpop.f32.mrb[0].mxu0
    %1804 = vmatprep.mubr.bf16.mxu0 0
    %1805 = vmatmul.mubr.bf16.gmra.mrb[0].mxu0 %v787
    %v1806 = vpop.f32.mrb[0].mxu0
    %v1807 = vadd.f32 %v415, %v1806
    %v1808 = vpop.f32.mrb[0].mxu0
    %v1809 = vpop.f32.mrb[0].mxu0
    %v1810 = vadd.f32 %v415, %v1809
    %v1811 = vpop.f32.mrb[0].mxu0
    %1812 = vmatprep.mubr.bf16.mxu0 0
    %1813 = vmatmul.mubr.bf16.gmra.mrb[0].mxu0 %v790
    %v1814 = vpop.f32.mrb[0].mxu0
    %v1815 = vadd.f32 %v415, %v1814
    %v1816 = vpop.f32.mrb[0].mxu0
    %v1817 = vpop.f32.mrb[0].mxu0
    %v1818 = vadd.f32 %v415, %v1817
    %v1819 = vpop.f32.mrb[0].mxu0
    %1820 = vmatprep.mubr.bf16.mxu0 0
    %1821 = vmatmul.mubr.bf16.gmra.mrb[0].mxu0 %v793
    %v1822 = vpop.f32.mrb[0].mxu0
    %v1823 = vadd.f32 %v415, %v1822
    %v1824 = vpop.f32.mrb[0].mxu0
    %v1825 = vpop.f32.mrb[0].mxu0
    %v1826 = vadd.f32 %v415, %v1825
    %v1827 = vpop.f32.mrb[0].mxu0
    %1828 = vmatprep.mubr.bf16.mxu0 0
    %1829 = vmatmul.mubr.bf16.gmra.mrb[0].mxu0 %v796
    %v1830 = vpop.f32.mrb[0].mxu0
    %v1831 = vadd.f32 %v415, %v1830
    %v1832 = vpop.f32.mrb[0].mxu0
    %v1833 = vpop.f32.mrb[0].mxu0
    %v1834 = vadd.f32 %v415, %v1833
    %v1835 = vpop.f32.mrb[0].mxu0
    %1836 = vmatprep.mubr.bf16.mxu0 0
    %1837 = vmatmul.mubr.bf16.gmra.mrb[0].mxu0 %v799
    %v1838 = vpop.f32.mrb[0].mxu0
    %v1839 = vadd.f32 %v415, %v1838
    %v1840 = vpop.f32.mrb[0].mxu0
    %v1841 = vpop.f32.mrb[0].mxu0
    %v1842 = vadd.f32 %v415, %v1841
    %v1843 = vpop.f32.mrb[0].mxu0
    %1844 = vmatprep.mubr.bf16.mxu0 0
    %1845 = vmatmul.mubr.bf16.gmra.mrb[0].mxu0 %v802
    %v1846 = vpop.f32.mrb[0].mxu0
    %v1847 = vadd.f32 %v415, %v1846
    %v1848 = vpop.f32.mrb[0].mxu0
    %v1849 = vpop.f32.mrb[0].mxu0
    %v1850 = vadd.f32 %v415, %v1849
    %v1851 = vpop.f32.mrb[0].mxu0
    %1852 = vmatprep.mubr.bf16.mxu0 0
    %1853 = vmatmul.mubr.bf16.gmra.mrb[0].mxu0 %v805
    %v1854 = vpop.f32.mrb[0].mxu0
    %v1855 = vadd.f32 %v415, %v1854
    %v1856 = vpop.f32.mrb[0].mxu0
    %v1857 = vpop.f32.mrb[0].mxu0
    %v1858 = vadd.f32 %v415, %v1857
    %v1859 = vpop.f32.mrb[0].mxu0
    %1860 = vmatprep.mubr.bf16.mxu0 0
    %1861 = vmatmul.mubr.bf16.gmra.mrb[0].mxu0 %v808
    %v1862 = vpop.f32.mrb[0].mxu0
    %v1863 = vadd.f32 %v415, %v1862
    %v1864 = vpop.f32.mrb[0].mxu0
    %v1865 = vpop.f32.mrb[0].mxu0
    %v1866 = vadd.f32 %v415, %v1865
    %v1867 = vpop.f32.mrb[0].mxu0
    %1868 = vmatprep.mubr.bf16.mxu0 0
    %1869 = vmatmul.mubr.bf16.gmra.mrb[0].mxu0 %v811
    %v1870 = vpop.f32.mrb[0].mxu0
    %v1871 = vadd.f32 %v415, %v1870
    %v1872 = vpop.f32.mrb[0].mxu0
    %v1873 = vpop.f32.mrb[0].mxu0
    %v1874 = vadd.f32 %v415, %v1873
    %v1875 = vpop.f32.mrb[0].mxu0
    %1876 = vdwg.mxu0
    %v1877 = vmax.f32 %v855, 0.0
    %v1878 = vmax.f32 %v858, 0.0
    %v1879 = vmax.f32 %v863, 0.0
    %v1880 = vmax.f32 %v866, 0.0
    %v1881 = vmax.f32 %v871, 0.0
    %v1882 = vmax.f32 %v874, 0.0
    %v1883 = vmax.f32 %v879, 0.0
    %v1884 = vmax.f32 %v882, 0.0
    %v1885 = vmax.f32 %v887, 0.0
    %v1886 = vmax.f32 %v890, 0.0
    %v1887 = vmax.f32 %v895, 0.0
    %v1888 = vmax.f32 %v898, 0.0
    %v1889 = vmax.f32 %v903, 0.0
    %v1890 = vmax.f32 %v906, 0.0
    %v1891 = vmax.f32 %v911, 0.0
    %v1892 = vmax.f32 %v914, 0.0
    %v1893 = vmax.f32 %v919, 0.0
    %v1894 = vmax.f32 %v922, 0.0
    %v1895 = vmax.f32 %v927, 0.0
    %v1896 = vmax.f32 %v930, 0.0
    %v1897 = vmax.f32 %v935, 0.0
    %v1898 = vmax.f32 %v938, 0.0
    %v1899 = vmax.f32 %v943, 0.0
    %v1900 = vmax.f32 %v946, 0.0
    %v1901 = vmax.f32 %v951, 0.0
    %v1902 = vmax.f32 %v954, 0.0
    %v1903 = vmax.f32 %v959, 0.0
    %v1904 = vmax.f32 %v962, 0.0
    %v1905 = vmax.f32 %v967, 0.0
    %v1906 = vmax.f32 %v970, 0.0
    %v1907 = vmax.f32 %v975, 0.0
    %v1908 = vmax.f32 %v978, 0.0
    %v1909 = vmax.f32 %v983, 0.0
    %v1910 = vmax.f32 %v986, 0.0
    %v1911 = vmax.f32 %v991, 0.0
    %v1912 = vmax.f32 %v994, 0.0
    %v1913 = vmax.f32 %v999, 0.0
    %v1914 = vmax.f32 %v1002, 0.0
    %v1915 = vmax.f32 %v1007, 0.0
    %v1916 = vmax.f32 %v1010, 0.0
    %v1917 = vmax.f32 %v1015, 0.0
    %v1918 = vmax.f32 %v1018, 0.0
    %v1919 = vmax.f32 %v1023, 0.0
    %v1920 = vmax.f32 %v1026, 0.0
    %v1921 = vmax.f32 %v1031, 0.0
    %v1922 = vmax.f32 %v1034, 0.0
    %v1923 = vmax.f32 %v1039, 0.0
    %v1924 = vmax.f32 %v1042, 0.0
    %v1925 = vmax.f32 %v1047, 0.0
    %v1926 = vmax.f32 %v1050, 0.0
    %v1927 = vmax.f32 %v1055, 0.0
    %v1928 = vmax.f32 %v1058, 0.0
    %v1929 = vmax.f32 %v1063, 0.0
    %v1930 = vmax.f32 %v1066, 0.0
    %v1931 = vmax.f32 %v1071, 0.0
    %v1932 = vmax.f32 %v1074, 0.0
    %v1933 = vmax.f32 %v1079, 0.0
    %v1934 = vmax.f32 %v1082, 0.0
    %v1935 = vmax.f32 %v1087, 0.0
    %v1936 = vmax.f32 %v1090, 0.0
    %v1937 = vmax.f32 %v1095, 0.0
    %v1938 = vmax.f32 %v1098, 0.0
    %v1939 = vmax.f32 %v1103, 0.0
    %v1940 = vmax.f32 %v1106, 0.0
    %v1941 = vmax.f32 %v1111, 0.0
    %v1942 = vmax.f32 %v1114, 0.0
    %v1943 = vmax.f32 %v1119, 0.0
    %v1944 = vmax.f32 %v1122, 0.0
    %v1945 = vmax.f32 %v1127, 0.0
    %v1946 = vmax.f32 %v1130, 0.0
    %v1947 = vmax.f32 %v1135, 0.0
    %v1948 = vmax.f32 %v1138, 0.0
    %v1949 = vmax.f32 %v1143, 0.0
    %v1950 = vmax.f32 %v1146, 0.0
    %v1951 = vmax.f32 %v1151, 0.0
    %v1952 = vmax.f32 %v1154, 0.0
    %v1953 = vmax.f32 %v1159, 0.0
    %v1954 = vmax.f32 %v1162, 0.0
    %v1955 = vmax.f32 %v1167, 0.0
    %v1956 = vmax.f32 %v1170, 0.0
    %v1957 = vmax.f32 %v1175, 0.0
    %v1958 = vmax.f32 %v1178, 0.0
    %v1959 = vmax.f32 %v1183, 0.0
    %v1960 = vmax.f32 %v1186, 0.0
    %v1961 = vmax.f32 %v1191, 0.0
    %v1962 = vmax.f32 %v1194, 0.0
    %v1963 = vmax.f32 %v1199, 0.0
    %v1964 = vmax.f32 %v1202, 0.0
    %v1965 = vmax.f32 %v1207, 0.0
    %v1966 = vmax.f32 %v1210, 0.0
    %v1967 = vmax.f32 %v1215, 0.0
    %v1968 = vmax.f32 %v1218, 0.0
    %v1969 = vmax.f32 %v1223, 0.0
    %v1970 = vmax.f32 %v1226, 0.0
    %v1971 = vmax.f32 %v1231, 0.0
    %v1972 = vmax.f32 %v1234, 0.0
    %v1973 = vmax.f32 %v1239, 0.0
    %v1974 = vmax.f32 %v1242, 0.0
    %v1975 = vmax.f32 %v1247, 0.0
    %v1976 = vmax.f32 %v1250, 0.0
    %v1977 = vmax.f32 %v1255, 0.0
    %v1978 = vmax.f32 %v1258, 0.0
    %v1979 = vmax.f32 %v1263, 0.0
    %v1980 = vmax.f32 %v1266, 0.0
    %v1981 = vmax.f32 %v1271, 0.0
    %v1982 = vmax.f32 %v1274, 0.0
    %v1983 = vmax.f32 %v1279, 0.0
    %v1984 = vmax.f32 %v1282, 0.0
    %v1985 = vmax.f32 %v1287, 0.0
    %v1986 = vmax.f32 %v1290, 0.0
    %v1987 = vmax.f32 %v1295, 0.0
    %v1988 = vmax.f32 %v1298, 0.0
    %v1989 = vmax.f32 %v1303, 0.0
    %v1990 = vmax.f32 %v1306, 0.0
    %v1991 = vmax.f32 %v1311, 0.0
    %v1992 = vmax.f32 %v1314, 0.0
    %v1993 = vmax.f32 %v1319, 0.0
    %v1994 = vmax.f32 %v1322, 0.0
    %v1995 = vmax.f32 %v1327, 0.0
    %v1996 = vmax.f32 %v1330, 0.0
    %v1997 = vmax.f32 %v1335, 0.0
    %v1998 = vmax.f32 %v1338, 0.0
    %v1999 = vmax.f32 %v1343, 0.0
    %v2000 = vmax.f32 %v1346, 0.0
    %v2001 = vmax.f32 %v1351, 0.0
    %v2002 = vmax.f32 %v1354, 0.0
    %v2003 = vmax.f32 %v1359, 0.0
    %v2004 = vmax.f32 %v1362, 0.0
    %v2005 = vmax.f32 %v1367, 0.0
    %v2006 = vmax.f32 %v1370, 0.0
    %v2007 = vmax.f32 %v1375, 0.0
    %v2008 = vmax.f32 %v1378, 0.0
    %v2009 = vmax.f32 %v1383, 0.0
    %v2010 = vmax.f32 %v1386, 0.0
    %v2011 = vmax.f32 %v1391, 0.0
    %v2012 = vmax.f32 %v1394, 0.0
    %v2013 = vmax.f32 %v1399, 0.0
    %v2014 = vmax.f32 %v1402, 0.0
    %v2015 = vmax.f32 %v1407, 0.0
    %v2016 = vmax.f32 %v1410, 0.0
    %v2017 = vmax.f32 %v1415, 0.0
    %v2018 = vmax.f32 %v1418, 0.0
    %v2019 = vmax.f32 %v1423, 0.0
    %v2020 = vmax.f32 %v1426, 0.0
    %v2021 = vmax.f32 %v1431, 0.0
    %v2022 = vmax.f32 %v1434, 0.0
    %v2023 = vmax.f32 %v1439, 0.0
    %v2024 = vmax.f32 %v1442, 0.0
    %v2025 = vmax.f32 %v1447, 0.0
    %v2026 = vmax.f32 %v1450, 0.0
    %v2027 = vmax.f32 %v1455, 0.0
    %v2028 = vmax.f32 %v1458, 0.0
    %v2029 = vmax.f32 %v1463, 0.0
    %v2030 = vmax.f32 %v1466, 0.0
    %v2031 = vmax.f32 %v1471, 0.0
    %v2032 = vmax.f32 %v1474, 0.0
    %v2033 = vmax.f32 %v1479, 0.0
    %v2034 = vmax.f32 %v1482, 0.0
    %v2035 = vmax.f32 %v1487, 0.0
    %v2036 = vmax.f32 %v1490, 0.0
    %v2037 = vmax.f32 %v1495, 0.0
    %v2038 = vmax.f32 %v1498, 0.0
    %v2039 = vmax.f32 %v1503, 0.0
    %v2040 = vmax.f32 %v1506, 0.0
    %v2041 = vmax.f32 %v1511, 0.0
    %v2042 = vmax.f32 %v1514, 0.0
    %v2043 = vmax.f32 %v1519, 0.0
    %v2044 = vmax.f32 %v1522, 0.0
    %v2045 = vmax.f32 %v1527, 0.0
    %v2046 = vmax.f32 %v1530, 0.0
    %v2047 = vmax.f32 %v1535, 0.0
    %v2048 = vmax.f32 %v1538, 0.0
    %v2049 = vmax.f32 %v1543, 0.0
    %v2050 = vmax.f32 %v1546, 0.0
    %v2051 = vmax.f32 %v1551, 0.0
    %v2052 = vmax.f32 %v1554, 0.0
    %v2053 = vmax.f32 %v1559, 0.0
    %v2054 = vmax.f32 %v1562, 0.0
    %v2055 = vmax.f32 %v1567, 0.0
    %v2056 = vmax.f32 %v1570, 0.0
    %v2057 = vmax.f32 %v1575, 0.0
    %v2058 = vmax.f32 %v1578, 0.0
    %v2059 = vmax.f32 %v1583, 0.0
    %v2060 = vmax.f32 %v1586, 0.0
    %v2061 = vmax.f32 %v1591, 0.0
    %v2062 = vmax.f32 %v1594, 0.0
    %v2063 = vmax.f32 %v1599, 0.0
    %v2064 = vmax.f32 %v1602, 0.0
    %v2065 = vmax.f32 %v1607, 0.0
    %v2066 = vmax.f32 %v1610, 0.0
    %v2067 = vmax.f32 %v1615, 0.0
    %v2068 = vmax.f32 %v1618, 0.0
    %v2069 = vmax.f32 %v1623, 0.0
    %v2070 = vmax.f32 %v1626, 0.0
    %v2071 = vmax.f32 %v1631, 0.0
    %v2072 = vmax.f32 %v1634, 0.0
    %v2073 = vmax.f32 %v1639, 0.0
    %v2074 = vmax.f32 %v1642, 0.0
    %v2075 = vmax.f32 %v1647, 0.0
    %v2076 = vmax.f32 %v1650, 0.0
    %v2077 = vmax.f32 %v1655, 0.0
    %v2078 = vmax.f32 %v1658, 0.0
    %v2079 = vmax.f32 %v1663, 0.0
    %v2080 = vmax.f32 %v1666, 0.0
    %v2081 = vmax.f32 %v1671, 0.0
    %v2082 = vmax.f32 %v1674, 0.0
    %v2083 = vmax.f32 %v1679, 0.0
    %v2084 = vmax.f32 %v1682, 0.0
    %v2085 = vmax.f32 %v1687, 0.0
    %v2086 = vmax.f32 %v1690, 0.0
    %v2087 = vmax.f32 %v1695, 0.0
    %v2088 = vmax.f32 %v1698, 0.0
    %v2089 = vmax.f32 %v1703, 0.0
    %v2090 = vmax.f32 %v1706, 0.0
    %v2091 = vmax.f32 %v1711, 0.0
    %v2092 = vmax.f32 %v1714, 0.0
    %v2093 = vmax.f32 %v1719, 0.0
    %v2094 = vmax.f32 %v1722, 0.0
    %v2095 = vmax.f32 %v1727, 0.0
    %v2096 = vmax.f32 %v1730, 0.0
    %v2097 = vmax.f32 %v1735, 0.0
    %v2098 = vmax.f32 %v1738, 0.0
    %v2099 = vmax.f32 %v1743, 0.0
    %v2100 = vmax.f32 %v1746, 0.0
    %v2101 = vmax.f32 %v1751, 0.0
    %v2102 = vmax.f32 %v1754, 0.0
    %v2103 = vmax.f32 %v1759, 0.0
    %v2104 = vmax.f32 %v1762, 0.0
    %v2105 = vmax.f32 %v1767, 0.0
    %v2106 = vmax.f32 %v1770, 0.0
    %v2107 = vmax.f32 %v1775, 0.0
    %v2108 = vmax.f32 %v1778, 0.0
    %v2109 = vmax.f32 %v1783, 0.0
    %v2110 = vmax.f32 %v1786, 0.0
    %v2111 = vmax.f32 %v1791, 0.0
    %v2112 = vmax.f32 %v1794, 0.0
    %v2113 = vmax.f32 %v1799, 0.0
    %v2114 = vmax.f32 %v1802, 0.0
    %v2115 = vmax.f32 %v1807, 0.0
    %v2116 = vmax.f32 %v1810, 0.0
    %v2117 = vmax.f32 %v1815, 0.0
    %v2118 = vmax.f32 %v1818, 0.0
    %v2119 = vmax.f32 %v1823, 0.0
    %v2120 = vmax.f32 %v1826, 0.0
    %v2121 = vmax.f32 %v1831, 0.0
    %v2122 = vmax.f32 %v1834, 0.0
    %v2123 = vmax.f32 %v1839, 0.0
    %v2124 = vmax.f32 %v1842, 0.0
    %v2125 = vmax.f32 %v1847, 0.0
    %v2126 = vmax.f32 %v1850, 0.0
    %v2127 = vmax.f32 %v1855, 0.0
    %v2128 = vmax.f32 %v1858, 0.0
    %v2129 = vmax.f32 %v1863, 0.0
    %v2130 = vmax.f32 %v1866, 0.0
    %v2131 = vmax.f32 %v1871, 0.0
    %v2132 = vmax.f32 %v1874, 0.0
    %vm2133 = vcmask 64512
    %v2134 = vsel %vm2133, %v1877, 0.0
    %v2135 = vsel %vm2133, %v1878, 0.0
    %v2136 = vadd.f32 %v2134, %v2135
    %v2137 = vsel %vm2133, %v1879, 0.0
    %v2138 = vadd.f32 %v2136, %v2137
    %v2139 = vsel %vm2133, %v1880, 0.0
    %v2140 = vadd.f32 %v2138, %v2139
    %v2141 = vsel %vm2133, %v1881, 0.0
    %v2142 = vadd.f32 %v2140, %v2141
    %v2143 = vsel %vm2133, %v1882, 0.0
    %v2144 = vadd.f32 %v2142, %v2143
    %v2145 = vsel %vm2133, %v1883, 0.0
    %v2146 = vadd.f32 %v2144, %v2145
    %v2147 = vsel %vm2133, %v1884, 0.0
    %v2148 = vadd.f32 %v2146, %v2147
    %v2149 = vsel %vm2133, %v1885, 0.0
    %v2150 = vadd.f32 %v2148, %v2149
    %v2151 = vsel %vm2133, %v1886, 0.0
    %v2152 = vadd.f32 %v2150, %v2151
    %v2153 = vsel %vm2133, %v1887, 0.0
    %v2154 = vadd.f32 %v2152, %v2153
    %v2155 = vsel %vm2133, %v1888, 0.0
    %v2156 = vadd.f32 %v2154, %v2155
    %v2157 = vsel %vm2133, %v1889, 0.0
    %v2158 = vadd.f32 %v2156, %v2157
    %v2159 = vsel %vm2133, %v1890, 0.0
    %v2160 = vadd.f32 %v2158, %v2159
    %v2161 = vsel %vm2133, %v1891, 0.0
    %v2162 = vadd.f32 %v2160, %v2161
    %v2163 = vsel %vm2133, %v1892, 0.0
    %v2164 = vadd.f32 %v2162, %v2163
    %v2165 = vsel %vm2133, %v1893, 0.0
    %v2166 = vadd.f32 %v2164, %v2165
    %v2167 = vsel %vm2133, %v1894, 0.0
    %v2168 = vadd.f32 %v2166, %v2167
    %v2169 = vsel %vm2133, %v1895, 0.0
    %v2170 = vadd.f32 %v2168, %v2169
    %v2171 = vsel %vm2133, %v1896, 0.0
    %v2172 = vadd.f32 %v2170, %v2171
    %v2173 = vsel %vm2133, %v1897, 0.0
    %v2174 = vadd.f32 %v2172, %v2173
    %v2175 = vsel %vm2133, %v1898, 0.0
    %v2176 = vadd.f32 %v2174, %v2175
    %v2177 = vsel %vm2133, %v1899, 0.0
    %v2178 = vadd.f32 %v2176, %v2177
    %v2179 = vsel %vm2133, %v1900, 0.0
    %v2180 = vadd.f32 %v2178, %v2179
    %v2181 = vsel %vm2133, %v1901, 0.0
    %v2182 = vadd.f32 %v2180, %v2181
    %v2183 = vsel %vm2133, %v1902, 0.0
    %v2184 = vadd.f32 %v2182, %v2183
    %v2185 = vsel %vm2133, %v1903, 0.0
    %v2186 = vadd.f32 %v2184, %v2185
    %v2187 = vsel %vm2133, %v1904, 0.0
    %v2188 = vadd.f32 %v2186, %v2187
    %v2189 = vsel %vm2133, %v1905, 0.0
    %v2190 = vadd.f32 %v2188, %v2189
    %v2191 = vsel %vm2133, %v1906, 0.0
    %v2192 = vadd.f32 %v2190, %v2191
    %v2193 = vsel %vm2133, %v1907, 0.0
    %v2194 = vadd.f32 %v2192, %v2193
    %v2195 = vsel %vm2133, %v1908, 0.0
    %v2196 = vadd.f32 %v2194, %v2195
    %v2197 = vrot.slane %v2196, 4
    %v2198 = vadd.f32 %v2196, %v2197
    %v2199 = vrot.slane %v2198, 2
    %v2200 = vadd.f32 %v2198, %v2199
    %v2201 = vrot.slane %v2200, 1
    %v2202 = vadd.f32 %v2200, %v2201
    %v2203 = vrcp.pop 256.0
    %v2204 = vmul.f32 %v2202, %v2203
    %v2205 = vsel %vm2133, %v1909, 0.0
    %v2206 = vsel %vm2133, %v1910, 0.0
    %v2207 = vadd.f32 %v2205, %v2206
    %v2208 = vsel %vm2133, %v1911, 0.0
    %v2209 = vadd.f32 %v2207, %v2208
    %v2210 = vsel %vm2133, %v1912, 0.0
    %v2211 = vadd.f32 %v2209, %v2210
    %v2212 = vsel %vm2133, %v1913, 0.0
    %v2213 = vadd.f32 %v2211, %v2212
    %v2214 = vsel %vm2133, %v1914, 0.0
    %v2215 = vadd.f32 %v2213, %v2214
    %v2216 = vsel %vm2133, %v1915, 0.0
    %v2217 = vadd.f32 %v2215, %v2216
    %v2218 = vsel %vm2133, %v1916, 0.0
    %v2219 = vadd.f32 %v2217, %v2218
    %v2220 = vsel %vm2133, %v1917, 0.0
    %v2221 = vadd.f32 %v2219, %v2220
    %v2222 = vsel %vm2133, %v1918, 0.0
    %v2223 = vadd.f32 %v2221, %v2222
    %v2224 = vsel %vm2133, %v1919, 0.0
    %v2225 = vadd.f32 %v2223, %v2224
    %v2226 = vsel %vm2133, %v1920, 0.0
    %v2227 = vadd.f32 %v2225, %v2226
    %v2228 = vsel %vm2133, %v1921, 0.0
    %v2229 = vadd.f32 %v2227, %v2228
    %v2230 = vsel %vm2133, %v1922, 0.0
    %v2231 = vadd.f32 %v2229, %v2230
    %v2232 = vsel %vm2133, %v1923, 0.0
    %v2233 = vadd.f32 %v2231, %v2232
    %v2234 = vsel %vm2133, %v1924, 0.0
    %v2235 = vadd.f32 %v2233, %v2234
    %v2236 = vsel %vm2133, %v1925, 0.0
    %v2237 = vadd.f32 %v2235, %v2236
    %v2238 = vsel %vm2133, %v1926, 0.0
    %v2239 = vadd.f32 %v2237, %v2238
    %v2240 = vsel %vm2133, %v1927, 0.0
    %v2241 = vadd.f32 %v2239, %v2240
    %v2242 = vsel %vm2133, %v1928, 0.0
    %v2243 = vadd.f32 %v2241, %v2242
    %v2244 = vsel %vm2133, %v1929, 0.0
    %v2245 = vadd.f32 %v2243, %v2244
    %v2246 = vsel %vm2133, %v1930, 0.0
    %v2247 = vadd.f32 %v2245, %v2246
    %v2248 = vsel %vm2133, %v1931, 0.0
    %v2249 = vadd.f32 %v2247, %v2248
    %v2250 = vsel %vm2133, %v1932, 0.0
    %v2251 = vadd.f32 %v2249, %v2250
    %v2252 = vsel %vm2133, %v1933, 0.0
    %v2253 = vadd.f32 %v2251, %v2252
    %v2254 = vsel %vm2133, %v1934, 0.0
    %v2255 = vadd.f32 %v2253, %v2254
    %v2256 = vsel %vm2133, %v1935, 0.0
    %v2257 = vadd.f32 %v2255, %v2256
    %v2258 = vsel %vm2133, %v1936, 0.0
    %v2259 = vadd.f32 %v2257, %v2258
    %v2260 = vsel %vm2133, %v1937, 0.0
    %v2261 = vadd.f32 %v2259, %v2260
    %v2262 = vsel %vm2133, %v1938, 0.0
    %v2263 = vadd.f32 %v2261, %v2262
    %v2264 = vsel %vm2133, %v1939, 0.0
    %v2265 = vadd.f32 %v2263, %v2264
    %v2266 = vsel %vm2133, %v1940, 0.0
    %v2267 = vadd.f32 %v2265, %v2266
    %v2268 = vrot.slane %v2267, 4
    %v2269 = vadd.f32 %v2267, %v2268
    %v2270 = vrot.slane %v2269, 2
    %v2271 = vadd.f32 %v2269, %v2270
    %v2272 = vrot.slane %v2271, 1
    %v2273 = vadd.f32 %v2271, %v2272
    %v2274 = vmul.f32 %v2273, %v2203
    %v2275 = vsel %vm2133, %v1941, 0.0
    %v2276 = vsel %vm2133, %v1942, 0.0
    %v2277 = vadd.f32 %v2275, %v2276
    %v2278 = vsel %vm2133, %v1943, 0.0
    %v2279 = vadd.f32 %v2277, %v2278
    %v2280 = vsel %vm2133, %v1944, 0.0
    %v2281 = vadd.f32 %v2279, %v2280
    %v2282 = vsel %vm2133, %v1945, 0.0
    %v2283 = vadd.f32 %v2281, %v2282
    %v2284 = vsel %vm2133, %v1946, 0.0
    %v2285 = vadd.f32 %v2283, %v2284
    %v2286 = vsel %vm2133, %v1947, 0.0
    %v2287 = vadd.f32 %v2285, %v2286
    %v2288 = vsel %vm2133, %v1948, 0.0
    %v2289 = vadd.f32 %v2287, %v2288
    %v2290 = vsel %vm2133, %v1949, 0.0
    %v2291 = vadd.f32 %v2289, %v2290
    %v2292 = vsel %vm2133, %v1950, 0.0
    %v2293 = vadd.f32 %v2291, %v2292
    %v2294 = vsel %vm2133, %v1951, 0.0
    %v2295 = vadd.f32 %v2293, %v2294
    %v2296 = vsel %vm2133, %v1952, 0.0
    %v2297 = vadd.f32 %v2295, %v2296
    %v2298 = vsel %vm2133, %v1953, 0.0
    %v2299 = vadd.f32 %v2297, %v2298
    %v2300 = vsel %vm2133, %v1954, 0.0
    %v2301 = vadd.f32 %v2299, %v2300
    %v2302 = vsel %vm2133, %v1955, 0.0
    %v2303 = vadd.f32 %v2301, %v2302
    %v2304 = vsel %vm2133, %v1956, 0.0
    %v2305 = vadd.f32 %v2303, %v2304
    %v2306 = vsel %vm2133, %v1957, 0.0
    %v2307 = vadd.f32 %v2305, %v2306
    %v2308 = vsel %vm2133, %v1958, 0.0
    %v2309 = vadd.f32 %v2307, %v2308
    %v2310 = vsel %vm2133, %v1959, 0.0
    %v2311 = vadd.f32 %v2309, %v2310
    %v2312 = vsel %vm2133, %v1960, 0.0
    %v2313 = vadd.f32 %v2311, %v2312
    %v2314 = vsel %vm2133, %v1961, 0.0
    %v2315 = vadd.f32 %v2313, %v2314
    %v2316 = vsel %vm2133, %v1962, 0.0
    %v2317 = vadd.f32 %v2315, %v2316
    %v2318 = vsel %vm2133, %v1963, 0.0
    %v2319 = vadd.f32 %v2317, %v2318
    %v2320 = vsel %vm2133, %v1964, 0.0
    %v2321 = vadd.f32 %v2319, %v2320
    %v2322 = vsel %vm2133, %v1965, 0.0
    %v2323 = vadd.f32 %v2321, %v2322
    %v2324 = vsel %vm2133, %v1966, 0.0
    %v2325 = vadd.f32 %v2323, %v2324
    %v2326 = vsel %vm2133, %v1967, 0.0
    %v2327 = vadd.f32 %v2325, %v2326
    %v2328 = vsel %vm2133, %v1968, 0.0
    %v2329 = vadd.f32 %v2327, %v2328
    %v2330 = vsel %vm2133, %v1969, 0.0
    %v2331 = vadd.f32 %v2329, %v2330
    %v2332 = vsel %vm2133, %v1970, 0.0
    %v2333 = vadd.f32 %v2331, %v2332
    %v2334 = vsel %vm2133, %v1971, 0.0
    %v2335 = vadd.f32 %v2333, %v2334
    %v2336 = vsel %vm2133, %v1972, 0.0
    %v2337 = vadd.f32 %v2335, %v2336
    %v2338 = vrot.slane %v2337, 4
    %v2339 = vadd.f32 %v2337, %v2338
    %v2340 = vrot.slane %v2339, 2
    %v2341 = vadd.f32 %v2339, %v2340
    %v2342 = vrot.slane %v2341, 1
    %v2343 = vadd.f32 %v2341, %v2342
    %v2344 = vmul.f32 %v2343, %v2203
    %v2345 = vsel %vm2133, %v1973, 0.0
    %v2346 = vsel %vm2133, %v1974, 0.0
    %v2347 = vadd.f32 %v2345, %v2346
    %v2348 = vsel %vm2133, %v1975, 0.0
    %v2349 = vadd.f32 %v2347, %v2348
    %v2350 = vsel %vm2133, %v1976, 0.0
    %v2351 = vadd.f32 %v2349, %v2350
    %v2352 = vsel %vm2133, %v1977, 0.0
    %v2353 = vadd.f32 %v2351, %v2352
    %v2354 = vsel %vm2133, %v1978, 0.0
    %v2355 = vadd.f32 %v2353, %v2354
    %v2356 = vsel %vm2133, %v1979, 0.0
    %v2357 = vadd.f32 %v2355, %v2356
    %v2358 = vsel %vm2133, %v1980, 0.0
    %v2359 = vadd.f32 %v2357, %v2358
    %v2360 = vsel %vm2133, %v1981, 0.0
    %v2361 = vadd.f32 %v2359, %v2360
    %v2362 = vsel %vm2133, %v1982, 0.0
    %v2363 = vadd.f32 %v2361, %v2362
    %v2364 = vsel %vm2133, %v1983, 0.0
    %v2365 = vadd.f32 %v2363, %v2364
    %v2366 = vsel %vm2133, %v1984, 0.0
    %v2367 = vadd.f32 %v2365, %v2366
    %v2368 = vsel %vm2133, %v1985, 0.0
    %v2369 = vadd.f32 %v2367, %v2368
    %v2370 = vsel %vm2133, %v1986, 0.0
    %v2371 = vadd.f32 %v2369, %v2370
    %v2372 = vsel %vm2133, %v1987, 0.0
    %v2373 = vadd.f32 %v2371, %v2372
    %v2374 = vsel %vm2133, %v1988, 0.0
    %v2375 = vadd.f32 %v2373, %v2374
    %v2376 = vsel %vm2133, %v1989, 0.0
    %v2377 = vadd.f32 %v2375, %v2376
    %v2378 = vsel %vm2133, %v1990, 0.0
    %v2379 = vadd.f32 %v2377, %v2378
    %v2380 = vsel %vm2133, %v1991, 0.0
    %v2381 = vadd.f32 %v2379, %v2380
    %v2382 = vsel %vm2133, %v1992, 0.0
    %v2383 = vadd.f32 %v2381, %v2382
    %v2384 = vsel %vm2133, %v1993, 0.0
    %v2385 = vadd.f32 %v2383, %v2384
    %v2386 = vsel %vm2133, %v1994, 0.0
    %v2387 = vadd.f32 %v2385, %v2386
    %v2388 = vsel %vm2133, %v1995, 0.0
    %v2389 = vadd.f32 %v2387, %v2388
    %v2390 = vsel %vm2133, %v1996, 0.0
    %v2391 = vadd.f32 %v2389, %v2390
    %v2392 = vsel %vm2133, %v1997, 0.0
    %v2393 = vadd.f32 %v2391, %v2392
    %v2394 = vsel %vm2133, %v1998, 0.0
    %v2395 = vadd.f32 %v2393, %v2394
    %v2396 = vsel %vm2133, %v1999, 0.0
    %v2397 = vadd.f32 %v2395, %v2396
    %v2398 = vsel %vm2133, %v2000, 0.0
    %v2399 = vadd.f32 %v2397, %v2398
    %v2400 = vsel %vm2133, %v2001, 0.0
    %v2401 = vadd.f32 %v2399, %v2400
    %v2402 = vsel %vm2133, %v2002, 0.0
    %v2403 = vadd.f32 %v2401, %v2402
    %v2404 = vsel %vm2133, %v2003, 0.0
    %v2405 = vadd.f32 %v2403, %v2404
    %v2406 = vsel %vm2133, %v2004, 0.0
    %v2407 = vadd.f32 %v2405, %v2406
    %v2408 = vrot.slane %v2407, 4
    %v2409 = vadd.f32 %v2407, %v2408
    %v2410 = vrot.slane %v2409, 2
    %v2411 = vadd.f32 %v2409, %v2410
    %v2412 = vrot.slane %v2411, 1
    %v2413 = vadd.f32 %v2411, %v2412
    %v2414 = vmul.f32 %v2413, %v2203
    %v2415 = vsel %vm2133, %v2005, 0.0
    %v2416 = vsel %vm2133, %v2006, 0.0
    %v2417 = vadd.f32 %v2415, %v2416
    %v2418 = vsel %vm2133, %v2007, 0.0
    %v2419 = vadd.f32 %v2417, %v2418
    %v2420 = vsel %vm2133, %v2008, 0.0
    %v2421 = vadd.f32 %v2419, %v2420
    %v2422 = vsel %vm2133, %v2009, 0.0
    %v2423 = vadd.f32 %v2421, %v2422
    %v2424 = vsel %vm2133, %v2010, 0.0
    %v2425 = vadd.f32 %v2423, %v2424
    %v2426 = vsel %vm2133, %v2011, 0.0
    %v2427 = vadd.f32 %v2425, %v2426
    %v2428 = vsel %vm2133, %v2012, 0.0
    %v2429 = vadd.f32 %v2427, %v2428
    %v2430 = vsel %vm2133, %v2013, 0.0
    %v2431 = vadd.f32 %v2429, %v2430
    %v2432 = vsel %vm2133, %v2014, 0.0
    %v2433 = vadd.f32 %v2431, %v2432
    %v2434 = vsel %vm2133, %v2015, 0.0
    %v2435 = vadd.f32 %v2433, %v2434
    %v2436 = vsel %vm2133, %v2016, 0.0
    %v2437 = vadd.f32 %v2435, %v2436
    %v2438 = vsel %vm2133, %v2017, 0.0
    %v2439 = vadd.f32 %v2437, %v2438
    %v2440 = vsel %vm2133, %v2018, 0.0
    %v2441 = vadd.f32 %v2439, %v2440
    %v2442 = vsel %vm2133, %v2019, 0.0
    %v2443 = vadd.f32 %v2441, %v2442
    %v2444 = vsel %vm2133, %v2020, 0.0
    %v2445 = vadd.f32 %v2443, %v2444
    %v2446 = vsel %vm2133, %v2021, 0.0
    %v2447 = vadd.f32 %v2445, %v2446
    %v2448 = vsel %vm2133, %v2022, 0.0
    %v2449 = vadd.f32 %v2447, %v2448
    %v2450 = vsel %vm2133, %v2023, 0.0
    %v2451 = vadd.f32 %v2449, %v2450
    %v2452 = vsel %vm2133, %v2024, 0.0
    %v2453 = vadd.f32 %v2451, %v2452
    %v2454 = vsel %vm2133, %v2025, 0.0
    %v2455 = vadd.f32 %v2453, %v2454
    %v2456 = vsel %vm2133, %v2026, 0.0
    %v2457 = vadd.f32 %v2455, %v2456
    %v2458 = vsel %vm2133, %v2027, 0.0
    %v2459 = vadd.f32 %v2457, %v2458
    %v2460 = vsel %vm2133, %v2028, 0.0
    %v2461 = vadd.f32 %v2459, %v2460
    %v2462 = vsel %vm2133, %v2029, 0.0
    %v2463 = vadd.f32 %v2461, %v2462
    %v2464 = vsel %vm2133, %v2030, 0.0
    %v2465 = vadd.f32 %v2463, %v2464
    %v2466 = vsel %vm2133, %v2031, 0.0
    %v2467 = vadd.f32 %v2465, %v2466
    %v2468 = vsel %vm2133, %v2032, 0.0
    %v2469 = vadd.f32 %v2467, %v2468
    %v2470 = vsel %vm2133, %v2033, 0.0
    %v2471 = vadd.f32 %v2469, %v2470
    %v2472 = vsel %vm2133, %v2034, 0.0
    %v2473 = vadd.f32 %v2471, %v2472
    %v2474 = vsel %vm2133, %v2035, 0.0
    %v2475 = vadd.f32 %v2473, %v2474
    %v2476 = vsel %vm2133, %v2036, 0.0
    %v2477 = vadd.f32 %v2475, %v2476
    %v2478 = vrot.slane %v2477, 4
    %v2479 = vadd.f32 %v2477, %v2478
    %v2480 = vrot.slane %v2479, 2
    %v2481 = vadd.f32 %v2479, %v2480
    %v2482 = vrot.slane %v2481, 1
    %v2483 = vadd.f32 %v2481, %v2482
    %v2484 = vmul.f32 %v2483, %v2203
    %v2485 = vsel %vm2133, %v2037, 0.0
    %v2486 = vsel %vm2133, %v2038, 0.0
    %v2487 = vadd.f32 %v2485, %v2486
    %v2488 = vsel %vm2133, %v2039, 0.0
    %v2489 = vadd.f32 %v2487, %v2488
    %v2490 = vsel %vm2133, %v2040, 0.0
    %v2491 = vadd.f32 %v2489, %v2490
    %v2492 = vsel %vm2133, %v2041, 0.0
    %v2493 = vadd.f32 %v2491, %v2492
    %v2494 = vsel %vm2133, %v2042, 0.0
    %v2495 = vadd.f32 %v2493, %v2494
    %v2496 = vsel %vm2133, %v2043, 0.0
    %v2497 = vadd.f32 %v2495, %v2496
    %v2498 = vsel %vm2133, %v2044, 0.0
    %v2499 = vadd.f32 %v2497, %v2498
    %v2500 = vsel %vm2133, %v2045, 0.0
    %v2501 = vadd.f32 %v2499, %v2500
    %v2502 = vsel %vm2133, %v2046, 0.0
    %v2503 = vadd.f32 %v2501, %v2502
    %v2504 = vsel %vm2133, %v2047, 0.0
    %v2505 = vadd.f32 %v2503, %v2504
    %v2506 = vsel %vm2133, %v2048, 0.0
    %v2507 = vadd.f32 %v2505, %v2506
    %v2508 = vsel %vm2133, %v2049, 0.0
    %v2509 = vadd.f32 %v2507, %v2508
    %v2510 = vsel %vm2133, %v2050, 0.0
    %v2511 = vadd.f32 %v2509, %v2510
    %v2512 = vsel %vm2133, %v2051, 0.0
    %v2513 = vadd.f32 %v2511, %v2512
    %v2514 = vsel %vm2133, %v2052, 0.0
    %v2515 = vadd.f32 %v2513, %v2514
    %v2516 = vsel %vm2133, %v2053, 0.0
    %v2517 = vadd.f32 %v2515, %v2516
    %v2518 = vsel %vm2133, %v2054, 0.0
    %v2519 = vadd.f32 %v2517, %v2518
    %v2520 = vsel %vm2133, %v2055, 0.0
    %v2521 = vadd.f32 %v2519, %v2520
    %v2522 = vsel %vm2133, %v2056, 0.0
    %v2523 = vadd.f32 %v2521, %v2522
    %v2524 = vsel %vm2133, %v2057, 0.0
    %v2525 = vadd.f32 %v2523, %v2524
    %v2526 = vsel %vm2133, %v2058, 0.0
    %v2527 = vadd.f32 %v2525, %v2526
    %v2528 = vsel %vm2133, %v2059, 0.0
    %v2529 = vadd.f32 %v2527, %v2528
    %v2530 = vsel %vm2133, %v2060, 0.0
    %v2531 = vadd.f32 %v2529, %v2530
    %v2532 = vsel %vm2133, %v2061, 0.0
    %v2533 = vadd.f32 %v2531, %v2532
    %v2534 = vsel %vm2133, %v2062, 0.0
    %v2535 = vadd.f32 %v2533, %v2534
    %v2536 = vsel %vm2133, %v2063, 0.0
    %v2537 = vadd.f32 %v2535, %v2536
    %v2538 = vsel %vm2133, %v2064, 0.0
    %v2539 = vadd.f32 %v2537, %v2538
    %v2540 = vsel %vm2133, %v2065, 0.0
    %v2541 = vadd.f32 %v2539, %v2540
    %v2542 = vsel %vm2133, %v2066, 0.0
    %v2543 = vadd.f32 %v2541, %v2542
    %v2544 = vsel %vm2133, %v2067, 0.0
    %v2545 = vadd.f32 %v2543, %v2544
    %v2546 = vsel %vm2133, %v2068, 0.0
    %v2547 = vadd.f32 %v2545, %v2546
    %v2548 = vrot.slane %v2547, 4
    %v2549 = vadd.f32 %v2547, %v2548
    %v2550 = vrot.slane %v2549, 2
    %v2551 = vadd.f32 %v2549, %v2550
    %v2552 = vrot.slane %v2551, 1
    %v2553 = vadd.f32 %v2551, %v2552
    %v2554 = vmul.f32 %v2553, %v2203
    %v2555 = vsel %vm2133, %v2069, 0.0
    %v2556 = vsel %vm2133, %v2070, 0.0
    %v2557 = vadd.f32 %v2555, %v2556
    %v2558 = vsel %vm2133, %v2071, 0.0
    %v2559 = vadd.f32 %v2557, %v2558
    %v2560 = vsel %vm2133, %v2072, 0.0
    %v2561 = vadd.f32 %v2559, %v2560
    %v2562 = vsel %vm2133, %v2073, 0.0
    %v2563 = vadd.f32 %v2561, %v2562
    %v2564 = vsel %vm2133, %v2074, 0.0
    %v2565 = vadd.f32 %v2563, %v2564
    %v2566 = vsel %vm2133, %v2075, 0.0
    %v2567 = vadd.f32 %v2565, %v2566
    %v2568 = vsel %vm2133, %v2076, 0.0
    %v2569 = vadd.f32 %v2567, %v2568
    %v2570 = vsel %vm2133, %v2077, 0.0
    %v2571 = vadd.f32 %v2569, %v2570
    %v2572 = vsel %vm2133, %v2078, 0.0
    %v2573 = vadd.f32 %v2571, %v2572
    %v2574 = vsel %vm2133, %v2079, 0.0
    %v2575 = vadd.f32 %v2573, %v2574
    %v2576 = vsel %vm2133, %v2080, 0.0
    %v2577 = vadd.f32 %v2575, %v2576
    %v2578 = vsel %vm2133, %v2081, 0.0
    %v2579 = vadd.f32 %v2577, %v2578
    %v2580 = vsel %vm2133, %v2082, 0.0
    %v2581 = vadd.f32 %v2579, %v2580
    %v2582 = vsel %vm2133, %v2083, 0.0
    %v2583 = vadd.f32 %v2581, %v2582
    %v2584 = vsel %vm2133, %v2084, 0.0
    %v2585 = vadd.f32 %v2583, %v2584
    %v2586 = vsel %vm2133, %v2085, 0.0
    %v2587 = vadd.f32 %v2585, %v2586
    %v2588 = vsel %vm2133, %v2086, 0.0
    %v2589 = vadd.f32 %v2587, %v2588
    %v2590 = vsel %vm2133, %v2087, 0.0
    %v2591 = vadd.f32 %v2589, %v2590
    %v2592 = vsel %vm2133, %v2088, 0.0
    %v2593 = vadd.f32 %v2591, %v2592
    %v2594 = vsel %vm2133, %v2089, 0.0
    %v2595 = vadd.f32 %v2593, %v2594
    %v2596 = vsel %vm2133, %v2090, 0.0
    %v2597 = vadd.f32 %v2595, %v2596
    %v2598 = vsel %vm2133, %v2091, 0.0
    %v2599 = vadd.f32 %v2597, %v2598
    %v2600 = vsel %vm2133, %v2092, 0.0
    %v2601 = vadd.f32 %v2599, %v2600
    %v2602 = vsel %vm2133, %v2093, 0.0
    %v2603 = vadd.f32 %v2601, %v2602
    %v2604 = vsel %vm2133, %v2094, 0.0
    %v2605 = vadd.f32 %v2603, %v2604
    %v2606 = vsel %vm2133, %v2095, 0.0
    %v2607 = vadd.f32 %v2605, %v2606
    %v2608 = vsel %vm2133, %v2096, 0.0
    %v2609 = vadd.f32 %v2607, %v2608
    %v2610 = vsel %vm2133, %v2097, 0.0
    %v2611 = vadd.f32 %v2609, %v2610
    %v2612 = vsel %vm2133, %v2098, 0.0
    %v2613 = vadd.f32 %v2611, %v2612
    %v2614 = vsel %vm2133, %v2099, 0.0
    %v2615 = vadd.f32 %v2613, %v2614
    %v2616 = vsel %vm2133, %v2100, 0.0
    %v2617 = vadd.f32 %v2615, %v2616
    %v2618 = vrot.slane %v2617, 4
    %v2619 = vadd.f32 %v2617, %v2618
    %v2620 = vrot.slane %v2619, 2
    %v2621 = vadd.f32 %v2619, %v2620
    %v2622 = vrot.slane %v2621, 1
    %v2623 = vadd.f32 %v2621, %v2622
    %v2624 = vmul.f32 %v2623, %v2203
    %v2625 = vsel %vm2133, %v2101, 0.0
    %v2626 = vsel %vm2133, %v2102, 0.0
    %v2627 = vadd.f32 %v2625, %v2626
    %v2628 = vsel %vm2133, %v2103, 0.0
    %v2629 = vadd.f32 %v2627, %v2628
    %v2630 = vsel %vm2133, %v2104, 0.0
    %v2631 = vadd.f32 %v2629, %v2630
    %v2632 = vsel %vm2133, %v2105, 0.0
    %v2633 = vadd.f32 %v2631, %v2632
    %v2634 = vsel %vm2133, %v2106, 0.0
    %v2635 = vadd.f32 %v2633, %v2634
    %v2636 = vsel %vm2133, %v2107, 0.0
    %v2637 = vadd.f32 %v2635, %v2636
    %v2638 = vsel %vm2133, %v2108, 0.0
    %v2639 = vadd.f32 %v2637, %v2638
    %v2640 = vsel %vm2133, %v2109, 0.0
    %v2641 = vadd.f32 %v2639, %v2640
    %v2642 = vsel %vm2133, %v2110, 0.0
    %v2643 = vadd.f32 %v2641, %v2642
    %v2644 = vsel %vm2133, %v2111, 0.0
    %v2645 = vadd.f32 %v2643, %v2644
    %v2646 = vsel %vm2133, %v2112, 0.0
    %v2647 = vadd.f32 %v2645, %v2646
    %v2648 = vsel %vm2133, %v2113, 0.0
    %v2649 = vadd.f32 %v2647, %v2648
    %v2650 = vsel %vm2133, %v2114, 0.0
    %v2651 = vadd.f32 %v2649, %v2650
    %v2652 = vsel %vm2133, %v2115, 0.0
    %v2653 = vadd.f32 %v2651, %v2652
    %v2654 = vsel %vm2133, %v2116, 0.0
    %v2655 = vadd.f32 %v2653, %v2654
    %v2656 = vsel %vm2133, %v2117, 0.0
    %v2657 = vadd.f32 %v2655, %v2656
    %v2658 = vsel %vm2133, %v2118, 0.0
    %v2659 = vadd.f32 %v2657, %v2658
    %v2660 = vsel %vm2133, %v2119, 0.0
    %v2661 = vadd.f32 %v2659, %v2660
    %v2662 = vsel %vm2133, %v2120, 0.0
    %v2663 = vadd.f32 %v2661, %v2662
    %v2664 = vsel %vm2133, %v2121, 0.0
    %v2665 = vadd.f32 %v2663, %v2664
    %v2666 = vsel %vm2133, %v2122, 0.0
    %v2667 = vadd.f32 %v2665, %v2666
    %v2668 = vsel %vm2133, %v2123, 0.0
    %v2669 = vadd.f32 %v2667, %v2668
    %v2670 = vsel %vm2133, %v2124, 0.0
    %v2671 = vadd.f32 %v2669, %v2670
    %v2672 = vsel %vm2133, %v2125, 0.0
    %v2673 = vadd.f32 %v2671, %v2672
    %v2674 = vsel %vm2133, %v2126, 0.0
    %v2675 = vadd.f32 %v2673, %v2674
    %v2676 = vsel %vm2133, %v2127, 0.0
    %v2677 = vadd.f32 %v2675, %v2676
    %v2678 = vsel %vm2133, %v2128, 0.0
    %v2679 = vadd.f32 %v2677, %v2678
    %v2680 = vsel %vm2133, %v2129, 0.0
    %v2681 = vadd.f32 %v2679, %v2680
    %v2682 = vsel %vm2133, %v2130, 0.0
    %v2683 = vadd.f32 %v2681, %v2682
    %v2684 = vsel %vm2133, %v2131, 0.0
    %v2685 = vadd.f32 %v2683, %v2684
    %v2686 = vsel %vm2133, %v2132, 0.0
    %v2687 = vadd.f32 %v2685, %v2686
    %v2688 = vrot.slane %v2687, 4
    %v2689 = vadd.f32 %v2687, %v2688
    %v2690 = vrot.slane %v2689, 2
    %v2691 = vadd.f32 %v2689, %v2690
    %v2692 = vrot.slane %v2691, 1
    %v2693 = vadd.f32 %v2691, %v2692
    %v2694 = vmul.f32 %v2693, %v2203
    %vm2695 = vcmask 1040384
    %v2696 = vsel %vm2695, %v2204, %v2274
    %vm2697 = vcmask 1041408
    %v2698 = vsel %vm2697, %v2696, %v2344
    %vm2699 = vcmask 1042432
    %v2700 = vsel %vm2699, %v2698, %v2414
    %vm2701 = vcmask 1043456
    %v2702 = vsel %vm2701, %v2700, %v2484
    %v2703 = vsel %vm813, %v2702, %v2554
    %v2704 = vsel %vm814, %v2703, %v2624
    %vm2705 = vcmask 1046528
    %v2706 = vsel %vm2705, %v2704, %v2694
    %v2707 = vpack.c.bf16 %v2706, %v2706
    %v2708 = vld [vmem:[%s3] sm:$0xf]
    %v2709 = vld [vmem:[%s4] sm:$0x1]
    %v2711 = vlaneseq
    %v2712 = vshrl.u32 %v2711, 7
    %v2713 = vsub.s32 0, %v2712
    %v2714 = vrot.slane %v2709, %v2713
    %v2717 = vsel %vm2133, %v2707, 0
    %v2720 = vsel %vm2701, %v2708, 0
    %2722 = vmatprep.subr.bf16.mxu0 0
    %2723 = vmatpush1.bf16.msra.mxu0 %v2720
    %2724 = vmatprep.subr.bf16.mxu0 0
    %2725 = vmatpush1.bf16.msra.mxu0 0
    %2726 = vmatprep.subr.bf16.mxu0 0
    %2727 = vmatpush1.bf16.msra.mxu0 0
    %2728 = vmatprep.subr.bf16.mxu0 0
    %2729 = vmatpush1.bf16.msra.mxu0 0
    %2730 = vmatprep.subr.bf16.mxu0 0
    %2731 = vmatpush1.bf16.msra.mxu0 0
    %2732 = vmatprep.subr.bf16.mxu0 0
    %2733 = vmatpush1.bf16.msra.mxu0 0
    %2734 = vmatprep.subr.bf16.mxu0 0
    %2735 = vmatpush1.bf16.msra.mxu0 0
    %2736 = vmatprep.subr.bf16.mxu0 0
    %2737 = vmatpush1.bf16.msra.mxu0 0
    %2738 = vmatprep.subr.bf16.mxu0 0
    %2739 = vmatpush1.bf16.msra.mxu0 0
    %2740 = vmatprep.subr.bf16.mxu0 0
    %2741 = vmatpush1.bf16.msra.mxu0 0
    %2742 = vmatprep.subr.bf16.mxu0 0
    %2743 = vmatpush1.bf16.msra.mxu0 0
    %2744 = vmatprep.subr.bf16.mxu0 0
    %2745 = vmatpush1.bf16.msra.mxu0 0
    %2746 = vmatprep.subr.bf16.mxu0 0
    %2747 = vmatpush1.bf16.msra.mxu0 0
    %2748 = vmatprep.subr.bf16.mxu0 0
    %2749 = vmatpush1.bf16.msra.mxu0 0
    %2750 = vmatprep.subr.bf16.mxu0 0
    %2751 = vmatpush1.bf16.msra.mxu0 0
    %2752 = vmatprep.subr.bf16.mxu0 0
    %2753 = vmatpush1.bf16.msra.mxu0 0
    %2754 = vmatprep.mubr.bf16.mxu0 0
    %2755 = vmatmul.mubr.bf16.gmra.mrb[0].mxu0 %v2717
    %v2756 = vpop.f32.mrb[0].mxu0
    %v2757 = vadd.f32 %v2714, %v2756
    %v2758 = vpop.f32.mrb[0].mxu0
    %v2759 = vpop.f32.mrb[0].mxu0
    %v2760 = vpop.f32.mrb[0].mxu0
    %2761 = vdwg.mxu0
    %v2762 = vmax.f32 %v2757, 0.0
    %vm2763 = vcmask 261120
    %2764 = vst.msk [vmem:[#allocation2] sm:$0xff] %vm2763, %v2762
    // Predicated region
    $region22: #{tpu_custom_call.1} parent=1 // pred_check
      _
    $region23: #{tpu_custom_call.1} parent=1 // pred_check_branch
      %2766 = sbr.rel (0) target = $region25
    $region24: #{tpu_custom_call.1} parent=1 // pred_region
      %s2768 = ssub.s32 128, 128
      %2769 = vsyncadd [#allocation3], %s2768
      %s2771 = sshll.u32 [#allocation2], 4
      %s2772 = int_to_ptr.vmem [resolvable:$true] %s2771
      %2774 = dma.vmem_to_hbm [thread:$0]  %s2772, 128, %s5, [#allocation3]
    $region25: #{tpu_custom_call.1} parent=1 // pred_fallthru
      _
    // Predicated region
    $region26: #{tpu_custom_call.1} parent=1 // pred_check
      _
    $region27: #{tpu_custom_call.1} parent=1 // pred_check_branch
      %2776 = sbr.rel (0) target = $region29
    $region28: #{tpu_custom_call.1} parent=1 // pred_region
      %2777 = dma.done [#allocation3], 128
    $region29: #{tpu_custom_call.1} parent=1 // pred_fallthru
      _
    %2778 = vsyncpa [#allocation3], 1

</llo_original>
